<compile_context>
chip_gen: v6e
topology: v6e:2x2x1
jax: 0.10.0
libtpu: 0.0.40
codegen_flags: <defaults>
</compile_context>

<pallas_src>
import jax
import jax.numpy as jnp
from jax.experimental import pallas as pl
from jax.experimental.pallas import tpu as pltpu

BN_EPS = 1e-5
K_PAD = 128   # fc1 contraction dim padded 50 -> 128
N_PAD = 128   # fc3 output dim padded 10 -> 128
HID = 512
IN_F = 50
OUT_F = 10


def mlp_kernel(x_ref, w12_ref, w3_ref, vec_ref, o_ref, xp_ref):
    # ---- in-kernel zero-pad of x: (B, 50) -> (B, 128) via VMEM scratch ----
    xp_ref[...] = jnp.zeros_like(xp_ref)          # zero all 128 lanes
    xp_ref[:, :IN_F] = x_ref[...]                 # masked store of 50 lanes
    x = xp_ref[...].astype(jnp.bfloat16)          # lane-dense (B, 128) read

    b1 = vec_ref[0:1, :]                          # (1, 512) f32
    gamma = vec_ref[1:2, :]
    beta = vec_ref[2:3, :]
    b3 = vec_ref[3:4, 0:N_PAD]                    # (1, 128) f32 (first 10 nonzero)

    w1 = w12_ref[0:K_PAD, :]                      # (128, 512) bf16 (rows >=50 zero)
    w2 = w12_ref[K_PAD:K_PAD + HID, :]            # (512, 512) bf16

    # fc1 + ReLU (padded K rows/lanes are zero -> contribute nothing)
    h1 = jnp.dot(x, w1, preferred_element_type=jnp.float32) + b1
    h1 = jnp.maximum(h1, 0.0)

    # fc2 WITHOUT bias: training-mode BN batch mean absorbs b2 exactly.
    h2 = jnp.dot(h1.astype(jnp.bfloat16), w2, preferred_element_type=jnp.float32)

    # BatchNorm1d (training semantics: batch mean, biased batch var), fused
    # into a single scale/shift; stats in f32.  Single-pass E[x^2]-mean^2.
    mean = jnp.mean(h2, axis=0, keepdims=True)
    mean_sq = jnp.mean(h2 * h2, axis=0, keepdims=True)
    var = jnp.maximum(mean_sq - mean * mean, 0.0)
    scale = gamma * jax.lax.rsqrt(var + BN_EPS)
    shift = beta - mean * scale
    h2n = jnp.maximum(h2 * scale + shift, 0.0)    # BN + ReLU

    # fc3 (N padded 10 -> 128; unmasked lane-dense store)
    o_ref[...] = jnp.dot(h2n.astype(jnp.bfloat16), w3_ref[...],
                         preferred_element_type=jnp.float32) + b3


def prepare_params(params):
    """One-time layout work: transpose to (in,out), cast weights to bf16,
    zero-pad K/N dims, concat w1|w2 into one slab, pack small vectors."""
    w1p = jnp.zeros((K_PAD, HID), jnp.bfloat16)
    w1p = w1p.at[:IN_F, :].set(params["w1"].T.astype(jnp.bfloat16))    # (128, 512)
    w2p = params["w2"].T.astype(jnp.bfloat16)                          # (512, 512)
    w12 = jnp.concatenate([w1p, w2p], axis=0)                          # (640, 512)

    w3p = jnp.zeros((HID, N_PAD), jnp.bfloat16)
    w3p = w3p.at[:, :OUT_F].set(params["w3"].T.astype(jnp.bfloat16))   # (512, 128)

    b3_pad = jnp.pad(params["b3"].astype(jnp.float32), (0, HID - OUT_F))
    vecs = jnp.stack([params["b1"].astype(jnp.float32),
                      params["gamma"].astype(jnp.float32),
                      params["beta"].astype(jnp.float32),
                      b3_pad], axis=0)                                 # (4, 512)
    # NOTE: b2 intentionally omitted (absorbed by training-mode BatchNorm).
    return dict(w12=w12, w3=w3p, vecs=vecs)


@jax.jit
def mlp_forward(x, prepped):
    """x: (B, 50) f32. prepped: output of prepare_params()."""
    B = x.shape[0]
    vmem = pl.BlockSpec(memory_space=pltpu.MemorySpace.VMEM)
    out = pl.pallas_call(
        mlp_kernel,
        out_shape=jax.ShapeDtypeStruct((B, N_PAD), jnp.float32),
        in_specs=[vmem] * 4,
        out_specs=vmem,
        scratch_shapes=[pltpu.VMEM((B, K_PAD), jnp.float32)],
    )(x, prepped["w12"], prepped["w3"], prepped["vecs"])
    return out[:, :OUT_F]


def init_params(key):
    """Deterministic synthetic parameters matching the PyTorch module shapes."""
    ks = jax.random.split(key, 3)

    def lin(k, fan_in, fan_out):
        bound = 1.0 / jnp.sqrt(fan_in)
        kw, kb = jax.random.split(k)
        w = jax.random.uniform(kw, (fan_out, fan_in), jnp.float32, -bound, bound)
        b = jax.random.uniform(kb, (fan_out,), jnp.float32, -bound, bound)
        return w, b

    w1, b1 = lin(ks[0], IN_F, HID)
    w2, b2 = lin(ks[1], HID, HID)
    w3, b3 = lin(ks[2], HID, OUT_F)
    gamma = jnp.ones((HID,), jnp.float32)
    beta = jnp.zeros((HID,), jnp.float32)
    return dict(w1=w1, b1=b1, w2=w2, b2=b2, w3=w3, b3=b3,
                gamma=gamma, beta=beta)


def reference_forward_f32(x, p):
    """Original full-f32 PyTorch semantics (includes b2; BN cancels it)."""
    h1 = jnp.maximum(x @ p["w1"].T + p["b1"], 0.0)
    h2 = h1 @ p["w2"].T + p["b2"]
    mean = jnp.mean(h2, axis=0, keepdims=True)
    var = jnp.mean((h2 - mean) ** 2, axis=0, keepdims=True)
    h2n = (h2 - mean) / jnp.sqrt(var + BN_EPS) * p["gamma"] + p["beta"]
    h2n = jnp.maximum(h2n, 0.0)
    return h2n @ p["w3"].T + p["b3"]


def reference_forward_matched(x, prepped):
    """Same bf16-quantized matmul path as the kernel (tight-tolerance check)."""
    bf, f32 = jnp.bfloat16, jnp.float32
    xq = jnp.pad(x, ((0, 0), (0, K_PAD - x.shape[1]))).astype(bf).astype(f32)
    w1 = prepped["w12"][:K_PAD].astype(f32)
    w2 = prepped["w12"][K_PAD:].astype(f32)
    b1 = prepped["vecs"][0:1, :]
    gamma = prepped["vecs"][1:2, :]
    beta = prepped["vecs"][2:3, :]
    b3 = prepped["vecs"][3:4, :N_PAD]

    h1 = jnp.maximum(xq @ w1 + b1, 0.0)
    h2 = h1.astype(bf).astype(f32) @ w2                      # no b2 (BN absorbs it)
    mean = jnp.mean(h2, axis=0, keepdims=True)
    var = jnp.maximum(jnp.mean(h2 * h2, axis=0, keepdims=True) - mean * mean, 0.0)
    scale = gamma * jax.lax.rsqrt(var + BN_EPS)
    shift = beta - mean * scale
    h2n = jnp.maximum(h2 * scale + shift, 0.0)
    out = h2n.astype(bf).astype(f32) @ prepped["w3"].astype(f32) + b3
    return out[:, :OUT_F]


if __name__ == "__main__":
    key = jax.random.PRNGKey(0)
    kx, kp = jax.random.split(key)

    B = 16   # multiple of 16: fills bf16 sublane packing; keep small for demo
    x = jax.random.normal(kx, (B, IN_F), jnp.float32)
    params = init_params(kp)
    prepped = prepare_params(params)   # one-time layout / bf16 / padding work

    out = mlp_forward(x, prepped)
    out = jax.block_until_ready(out)
    assert out.shape == (B, OUT_F)

    # Tight check vs. a reference that uses the identical bf16 quantization.
    ref_m = reference_forward_matched(x, prepped)
    assert jnp.allclose(out, ref_m, atol=2e-3, rtol=2e-3), "mismatch vs matched ref"

    # Loose check vs. the original full-f32 PyTorch semantics (bf16 rounding).
    ref_f = reference_forward_f32(x, params)
    assert jnp.allclose(out, ref_f, atol=3e-2, rtol=3e-2), "mismatch vs f32 ref"

    print("KERNEL_OK")
</pallas_src>

<mosaic_0001>
module attributes {stable_mosaic.version = 11 : i64} {
  func.func @mlp_kernel(%arg0: memref<16x50xf32, #tpu.memory_space<vmem>>, %arg1: memref<640x512xbf16, #tpu.memory_space<vmem>>, %arg2: memref<512x128xbf16, #tpu.memory_space<vmem>>, %arg3: memref<4x512xf32, #tpu.memory_space<vmem>>, %arg4: memref<16x128xf32, #tpu.memory_space<vmem>>, %arg5: memref<16x128xf32, #tpu.memory_space<vmem>>) attributes {dimension_semantics = [], scalar_prefetch = 0 : i64, scratch_operands = 1 : i64, tpu.core_type = #tpu.core_type<tc>} {
    %cst = arith.constant 0.000000e+00 : f32
    %0 = vector.broadcast %cst : f32 to vector<16x128xf32>
    %c0 = arith.constant 0 : index
    %c0_0 = arith.constant 0 : index
    %1 = vector.load %arg5[%c0, %c0_0] : memref<16x128xf32, #tpu.memory_space<vmem>>, vector<16x128xf32>
    tpu.vector_store %arg5[%c0, %c0_0], %0 {strides = array<i32>} : memref<16x128xf32, #tpu.memory_space<vmem>>, vector<16x128xf32>,
    %c0_1 = arith.constant 0 : index
    %c0_2 = arith.constant 0 : index
    %2 = vector.load %arg0[%c0_1, %c0_2] : memref<16x50xf32, #tpu.memory_space<vmem>>, vector<16x50xf32>
    %c0_3 = arith.constant 0 : index
    %c0_4 = arith.constant 0 : index
    %3 = vector.load %arg5[%c0_3, %c0_4] : memref<16x128xf32, #tpu.memory_space<vmem>>, vector<16x50xf32>
    tpu.vector_store %arg5[%c0_3, %c0_4], %2 {strides = array<i32>} : memref<16x128xf32, #tpu.memory_space<vmem>>, vector<16x50xf32>,
    %c0_5 = arith.constant 0 : index
    %c0_6 = arith.constant 0 : index
    %4 = vector.load %arg5[%c0_5, %c0_6] : memref<16x128xf32, #tpu.memory_space<vmem>>, vector<16x128xf32>
    %5 = arith.truncf %4 : vector<16x128xf32> to vector<16x128xbf16>
    %c0_7 = arith.constant 0 : index
    %c0_8 = arith.constant 0 : index
    %6 = vector.load %arg3[%c0_7, %c0_8] : memref<4x512xf32, #tpu.memory_space<vmem>>, vector<1x512xf32>
    %c1 = arith.constant 1 : index
    %c0_9 = arith.constant 0 : index
    %7 = vector.load %arg3[%c1, %c0_9] : memref<4x512xf32, #tpu.memory_space<vmem>>, vector<1x512xf32>
    %c2 = arith.constant 2 : index
    %c0_10 = arith.constant 0 : index
    %8 = vector.load %arg3[%c2, %c0_10] : memref<4x512xf32, #tpu.memory_space<vmem>>, vector<1x512xf32>
    %c3 = arith.constant 3 : index
    %c0_11 = arith.constant 0 : index
    %9 = vector.load %arg3[%c3, %c0_11] : memref<4x512xf32, #tpu.memory_space<vmem>>, vector<1x128xf32>
    %c0_12 = arith.constant 0 : index
    %c0_13 = arith.constant 0 : index
    %10 = vector.load %arg1[%c0_12, %c0_13] : memref<640x512xbf16, #tpu.memory_space<vmem>>, vector<128x512xbf16>
    %c128 = arith.constant 128 : index
    %c0_14 = arith.constant 0 : index
    %11 = vector.load %arg1[%c128, %c0_14] : memref<640x512xbf16, #tpu.memory_space<vmem>>, vector<512x512xbf16>
    %cst_15 = arith.constant dense<0.000000e+00> : vector<16x512xf32>
    %12 = tpu.matmul %5, %10, %cst_15 {dimension_numbers = #tpu.dot_dimension_numbers<[1], [0], [0], [1], [0, 0, 1, 1], [], []>} : vector<16x128xbf16>, vector<128x512xbf16>, vector<16x512xf32> -> vector<16x512xf32>
    %13 = vector.broadcast %6 : vector<1x512xf32> to vector<16x512xf32>
    %14 = arith.addf %12, %13 : vector<16x512xf32>
    %cst_16 = arith.constant 0.000000e+00 : f32
    %15 = vector.broadcast %cst_16 : f32 to vector<16x512xf32>
    %16 = arith.maximumf %14, %15 : vector<16x512xf32>
    %17 = arith.truncf %16 : vector<16x512xf32> to vector<16x512xbf16>
    %cst_17 = arith.constant dense<0.000000e+00> : vector<16x512xf32>
    %18 = tpu.matmul %17, %11, %cst_17 {dimension_numbers = #tpu.dot_dimension_numbers<[1], [0], [0], [1], [0, 0, 1, 1], [], []>} : vector<16x512xbf16>, vector<512x512xbf16>, vector<16x512xf32> -> vector<16x512xf32>
    %cst_18 = arith.constant dense<0.000000e+00> : vector<512xf32>
    %19 = vector.multi_reduction <add>, %18, %cst_18 [0] : vector<16x512xf32> to vector<512xf32>
    %20 = vector.shape_cast %19 : vector<512xf32> to vector<1x512xf32>
    %cst_19 = arith.constant 1.600000e+01 : f32
    %21 = vector.broadcast %cst_19 : f32 to vector<1x512xf32>
    %22 = arith.divf %20, %21 : vector<1x512xf32>
    %23 = arith.mulf %18, %18 : vector<16x512xf32>
    %cst_20 = arith.constant dense<0.000000e+00> : vector<512xf32>
    %24 = vector.multi_reduction <add>, %23, %cst_20 [0] : vector<16x512xf32> to vector<512xf32>
    %25 = vector.shape_cast %24 : vector<512xf32> to vector<1x512xf32>
    %cst_21 = arith.constant 1.600000e+01 : f32
    %26 = vector.broadcast %cst_21 : f32 to vector<1x512xf32>
    %27 = arith.divf %25, %26 : vector<1x512xf32>
    %28 = arith.mulf %22, %22 : vector<1x512xf32>
    %29 = arith.subf %27, %28 : vector<1x512xf32>
    %cst_22 = arith.constant 0.000000e+00 : f32
    %30 = vector.broadcast %cst_22 : f32 to vector<1x512xf32>
    %31 = arith.maximumf %29, %30 : vector<1x512xf32>
    %cst_23 = arith.constant 9.99999974E-6 : f32
    %32 = vector.broadcast %cst_23 : f32 to vector<1x512xf32>
    %33 = arith.addf %31, %32 : vector<1x512xf32>
    %34 = math.rsqrt %33 : vector<1x512xf32>
    %35 = arith.mulf %7, %34 : vector<1x512xf32>
    %36 = arith.mulf %22, %35 : vector<1x512xf32>
    %37 = arith.subf %8, %36 : vector<1x512xf32>
    %38 = vector.broadcast %35 : vector<1x512xf32> to vector<16x512xf32>
    %39 = arith.mulf %18, %38 : vector<16x512xf32>
    %40 = vector.broadcast %37 : vector<1x512xf32> to vector<16x512xf32>
    %41 = arith.addf %39, %40 : vector<16x512xf32>
    %cst_24 = arith.constant 0.000000e+00 : f32
    %42 = vector.broadcast %cst_24 : f32 to vector<16x512xf32>
    %43 = arith.maximumf %41, %42 : vector<16x512xf32>
    %44 = arith.truncf %43 : vector<16x512xf32> to vector<16x512xbf16>
    %c0_25 = arith.constant 0 : index
    %c0_26 = arith.constant 0 : index
    %45 = vector.load %arg2[%c0_25, %c0_26] : memref<512x128xbf16, #tpu.memory_space<vmem>>, vector<512x128xbf16>
    %cst_27 = arith.constant dense<0.000000e+00> : vector<16x128xf32>
    %46 = tpu.matmul %44, %45, %cst_27 {dimension_numbers = #tpu.dot_dimension_numbers<[1], [0], [0], [1], [0, 0, 1, 1], [], []>} : vector<16x512xbf16>, vector<512x128xbf16>, vector<16x128xf32> -> vector<16x128xf32>
    %47 = vector.broadcast %9 : vector<1x128xf32> to vector<16x128xf32>
    %48 = arith.addf %46, %47 : vector<16x128xf32>
    %c0_28 = arith.constant 0 : index
    %c0_29 = arith.constant 0 : index
    %49 = vector.load %arg4[%c0_28, %c0_29] : memref<16x128xf32, #tpu.memory_space<vmem>>, vector<16x128xf32>
    tpu.vector_store %arg4[%c0_28, %c0_29], %48 {strides = array<i32>} : memref<16x128xf32, #tpu.memory_space<vmem>>, vector<16x128xf32>,
    return
  }
}

</mosaic_0001>

<llo_original>
// kernel: mlp_forward.1
$region0: #{mlp_forward.1}
  #allocation0 [shape = 'u32[]', space=smem, size = 0x4, offset = 0x4, fixed_abs, tag = 'smem constant byte address 0x4 - core index']
  #allocation1 [shape = 'u32[144,128]{1,0:T(1,128)}', space=vmem, size = 0x12000, scoped, tag = 'internal scratch']
  #allocation2 [shape = 'f32[16,128]{1,0:T(8,128)}', space=vmem, size = 0x2000, scoped, tag = 'scratch operand']
  %s0 = inlined_call_operand.hbm [shape: f32[16,50], index: 0, kind: input, shape index: {}]
  %s1 = inlined_call_operand.hbm [shape: bf16[640,512], index: 1, kind: input, shape index: {}]
  %s2 = inlined_call_operand.hbm [shape: bf16[512,128], index: 2, kind: input, shape index: {}]
  %s3 = inlined_call_operand.hbm [shape: f32[4,512], index: 3, kind: input, shape index: {}]
  %s4 = inlined_call_operand.hbm [shape: f32[16,128], index: 4, kind: output, shape index: {}]
  %s5 = sld [smem:[#allocation0]]
  $region42: #{mlp_forward.1} parent=0
    _
  %s7 = ssub.s32 1, %s5
  %s8 = scalar_select 0, %s7, %s5
  $region1: #{mlp_forward.1} parent=0
    #allocation3 [shape = 'u8[8192]{0}', space=vmem, size = 0x2000, scoped, tag = 'input window, operand 0, single buffered']
    #allocation4 [shape = 's32[1]{0}', space=sflag, size = 0x4, scoped, tag = 'scoped memory for mlp_forward.1']
    #allocation5 [shape = 's32[1]{0}', space=sflag, size = 0x4, scoped, tag = 'scoped memory for mlp_forward.1']
    #allocation6 [shape = 'u8[655360]{0}', space=vmem, size = 0xa0000, scoped, tag = 'input window, operand 1, single buffered']
    #allocation7 [shape = 's32[1]{0}', space=sflag, size = 0x4, scoped, tag = 'scoped memory for mlp_forward.1']
    #allocation8 [shape = 'u8[131072]{0}', space=vmem, size = 0x20000, scoped, tag = 'input window, operand 2, single buffered']
    #allocation9 [shape = 'u8[8192]{0}', space=vmem, size = 0x2000, scoped, tag = 'input window, operand 3, single buffered']
    #allocation10 [shape = 's32[1]{0}', space=sflag, size = 0x4, scoped, tag = 'scoped memory for mlp_forward.1']
    #allocation11 [shape = 'u8[8192]{0}', space=vmem, size = 0x2000, scoped, tag = 'output window, operand 0, single buffered']
    %9 = vsyncpa [#allocation4], 0
    %10 = vsyncpa [#allocation7], 0
    %11 = vsyncpa [#allocation10], 0
    %12 = vsyncpa [#allocation5], 0
    // Predicated region
    $region2: #{mlp_forward.1} parent=1 // pred_check
      _
    $region3: #{mlp_forward.1} parent=1 // pred_check_branch
      %14 = sbr.rel (0) target = $region5
    $region4: #{mlp_forward.1} parent=1 // pred_region
      %s16 = ssub.s32 256, 256
      %17 = vsyncadd [#allocation4], %s16
      %s18 = sshll.u32 [#allocation3], 4
      %s19 = int_to_ptr.vmem [resolvable:$true] %s18
      %24 = dma.hbm_to_vmem [thread:$0]  %s0, 256, %s19, [#allocation4], 128, 128, 8
    $region5: #{mlp_forward.1} parent=1 // pred_fallthru
      _
    // Predicated region
    $region6: #{mlp_forward.1} parent=1 // pred_check
      _
    $region7: #{mlp_forward.1} parent=1 // pred_check_branch
      %26 = sbr.rel (0) target = $region9
    $region8: #{mlp_forward.1} parent=1 // pred_region
      %s28 = ssub.s32 20480, 20480
      %29 = vsyncadd [#allocation7], %s28
      %s30 = sshll.u32 [#allocation6], 4
      %s31 = int_to_ptr.vmem [resolvable:$true] %s30
      %36 = dma.hbm_to_vmem [thread:$0]  %s1, 20480, %s31, [#allocation7], 256, 256, 16
    $region9: #{mlp_forward.1} parent=1 // pred_fallthru
      _
    // Predicated region
    $region10: #{mlp_forward.1} parent=1 // pred_check
      _
    $region11: #{mlp_forward.1} parent=1 // pred_check_branch
      %38 = sbr.rel (0) target = $region13
    $region12: #{mlp_forward.1} parent=1 // pred_region
      %s40 = ssub.s32 4096, 4096
      %41 = vsyncadd [#allocation7], %s40
      %s42 = sshll.u32 [#allocation8], 4
      %s43 = int_to_ptr.vmem [resolvable:$true] %s42
      %48 = dma.hbm_to_vmem [thread:$0]  %s2, 4096, %s43, [#allocation7], 64, 64, 4
    $region13: #{mlp_forward.1} parent=1 // pred_fallthru
      _
    // Predicated region
    $region14: #{mlp_forward.1} parent=1 // pred_check
      _
    $region15: #{mlp_forward.1} parent=1 // pred_check_branch
      %50 = sbr.rel (0) target = $region17
    $region16: #{mlp_forward.1} parent=1 // pred_region
      %s52 = ssub.s32 256, 256
      %53 = vsyncadd [#allocation10], %s52
      %s55 = sshll.u32 [#allocation9], 4
      %s56 = int_to_ptr.vmem [resolvable:$true] %s55
      %58 = dma.hbm_to_vmem [thread:$0]  %s3, 256, %s56, [#allocation10]
    $region17: #{mlp_forward.1} parent=1 // pred_fallthru
      _
    // Predicated region
    $region18: #{mlp_forward.1} parent=1 // pred_check
      _
    $region19: #{mlp_forward.1} parent=1 // pred_check_branch
      %60 = sbr.rel (0) target = $region21
    $region20: #{mlp_forward.1} parent=1 // pred_region
      %61 = dma.done [#allocation4], 256
    $region21: #{mlp_forward.1} parent=1 // pred_fallthru
      _
    // Predicated region
    $region22: #{mlp_forward.1} parent=1 // pred_check
      _
    $region23: #{mlp_forward.1} parent=1 // pred_check_branch
      %63 = sbr.rel (0) target = $region25
    $region24: #{mlp_forward.1} parent=1 // pred_region
      %64 = dma.done [#allocation7], 20480
    $region25: #{mlp_forward.1} parent=1 // pred_fallthru
      _
    // Predicated region
    $region26: #{mlp_forward.1} parent=1 // pred_check
      _
    $region27: #{mlp_forward.1} parent=1 // pred_check_branch
      %66 = sbr.rel (0) target = $region29
    $region28: #{mlp_forward.1} parent=1 // pred_region
      %67 = dma.done [#allocation7], 4096
    $region29: #{mlp_forward.1} parent=1 // pred_fallthru
      _
    // Predicated region
    $region30: #{mlp_forward.1} parent=1 // pred_check
      _
    $region31: #{mlp_forward.1} parent=1 // pred_check_branch
      %69 = sbr.rel (0) target = $region33
    $region32: #{mlp_forward.1} parent=1 // pred_region
      %70 = dma.done [#allocation10], 256
    $region33: #{mlp_forward.1} parent=1 // pred_fallthru
      _
    %72 = vst [vmem:[#allocation2] sm:$0xff] 0.0
    %73 = vst [vmem:[#allocation2 + $0x8] sm:$0xff] 0.0
    %v74 = vld [vmem:[#allocation3] sm:$0xff]
    %v75 = vld [vmem:[#allocation3 + $0x8] sm:$0xff]
    %vm76 = vcmask 408576
    %77 = vst.msk [vmem:[#allocation2] sm:$0xff] %vm76, %v74
    %78 = vst.msk [vmem:[#allocation2 + $0x8] sm:$0xff] %vm76, %v75
    %v79 = vld [vmem:[#allocation2] sm:$0xff]
    %v80 = vld [vmem:[#allocation2 + $0x8] sm:$0xff]
    %v81 = vpack.c.bf16 %v80, %v79
    %v82 = vld [vmem:[#allocation9] ss:$4 sm:$0xf]
    %s83 = scalar_lea.vmem [#allocation9], 1
    %v84 = vld [vmem:[%s83] ss:$4 sm:$0xf]
    %s85 = scalar_lea.vmem [#allocation9], 2
    %v86 = vld [vmem:[%s85] ss:$4 sm:$0xf]
    %v87 = vld [vmem:[#allocation9 + $0x3] sm:$0x1]
    %v88 = vld [vmem:[#allocation6] sm:$0xff]
    %v89 = vld [vmem:[#allocation6 + $0x8] sm:$0xff]
    %v90 = vld [vmem:[#allocation6 + $0x10] sm:$0xff]
    %v91 = vld [vmem:[#allocation6 + $0x18] sm:$0xff]
    %v92 = vld [vmem:[#allocation6 + $0x20] sm:$0xff]
    %v93 = vld [vmem:[#allocation6 + $0x28] sm:$0xff]
    %v94 = vld [vmem:[#allocation6 + $0x30] sm:$0xff]
    %v95 = vld [vmem:[#allocation6 + $0x38] sm:$0xff]
    %v96 = vld [vmem:[#allocation6 + $0x40] sm:$0xff]
    %v97 = vld [vmem:[#allocation6 + $0x48] sm:$0xff]
    %v98 = vld [vmem:[#allocation6 + $0x50] sm:$0xff]
    %v99 = vld [vmem:[#allocation6 + $0x58] sm:$0xff]
    %v100 = vld [vmem:[#allocation6 + $0x60] sm:$0xff]
    %v101 = vld [vmem:[#allocation6 + $0x68] sm:$0xff]
    %v102 = vld [vmem:[#allocation6 + $0x70] sm:$0xff]
    %v103 = vld [vmem:[#allocation6 + $0x78] sm:$0xff]
    %v104 = vld [vmem:[#allocation6 + $0x80] sm:$0xff]
    %v105 = vld [vmem:[#allocation6 + $0x88] sm:$0xff]
    %v106 = vld [vmem:[#allocation6 + $0x90] sm:$0xff]
    %v107 = vld [vmem:[#allocation6 + $0x98] sm:$0xff]
    %v108 = vld [vmem:[#allocation6 + $0xa0] sm:$0xff]
    %v109 = vld [vmem:[#allocation6 + $0xa8] sm:$0xff]
    %v110 = vld [vmem:[#allocation6 + $0xb0] sm:$0xff]
    %v111 = vld [vmem:[#allocation6 + $0xb8] sm:$0xff]
    %v112 = vld [vmem:[#allocation6 + $0xc0] sm:$0xff]
    %v113 = vld [vmem:[#allocation6 + $0xc8] sm:$0xff]
    %v114 = vld [vmem:[#allocation6 + $0xd0] sm:$0xff]
    %v115 = vld [vmem:[#allocation6 + $0xd8] sm:$0xff]
    %v116 = vld [vmem:[#allocation6 + $0xe0] sm:$0xff]
    %v117 = vld [vmem:[#allocation6 + $0xe8] sm:$0xff]
    %v118 = vld [vmem:[#allocation6 + $0xf0] sm:$0xff]
    %v119 = vld [vmem:[#allocation6 + $0xf8] sm:$0xff]
    %v120 = vld [vmem:[#allocation6 + $0x100] sm:$0xff]
    %v121 = vld [vmem:[#allocation6 + $0x108] sm:$0xff]
    %v122 = vld [vmem:[#allocation6 + $0x110] sm:$0xff]
    %v123 = vld [vmem:[#allocation6 + $0x118] sm:$0xff]
    %v124 = vld [vmem:[#allocation6 + $0x120] sm:$0xff]
    %v125 = vld [vmem:[#allocation6 + $0x128] sm:$0xff]
    %v126 = vld [vmem:[#allocation6 + $0x130] sm:$0xff]
    %v127 = vld [vmem:[#allocation6 + $0x138] sm:$0xff]
    %v128 = vld [vmem:[#allocation6 + $0x140] sm:$0xff]
    %v129 = vld [vmem:[#allocation6 + $0x148] sm:$0xff]
    %v130 = vld [vmem:[#allocation6 + $0x150] sm:$0xff]
    %v131 = vld [vmem:[#allocation6 + $0x158] sm:$0xff]
    %v132 = vld [vmem:[#allocation6 + $0x160] sm:$0xff]
    %v133 = vld [vmem:[#allocation6 + $0x168] sm:$0xff]
    %v134 = vld [vmem:[#allocation6 + $0x170] sm:$0xff]
    %v135 = vld [vmem:[#allocation6 + $0x178] sm:$0xff]
    %v136 = vld [vmem:[#allocation6 + $0x180] sm:$0xff]
    %v137 = vld [vmem:[#allocation6 + $0x188] sm:$0xff]
    %v138 = vld [vmem:[#allocation6 + $0x190] sm:$0xff]
    %v139 = vld [vmem:[#allocation6 + $0x198] sm:$0xff]
    %v140 = vld [vmem:[#allocation6 + $0x1a0] sm:$0xff]
    %v141 = vld [vmem:[#allocation6 + $0x1a8] sm:$0xff]
    %v142 = vld [vmem:[#allocation6 + $0x1b0] sm:$0xff]
    %v143 = vld [vmem:[#allocation6 + $0x1b8] sm:$0xff]
    %v144 = vld [vmem:[#allocation6 + $0x1c0] sm:$0xff]
    %v145 = vld [vmem:[#allocation6 + $0x1c8] sm:$0xff]
    %v146 = vld [vmem:[#allocation6 + $0x1d0] sm:$0xff]
    %v147 = vld [vmem:[#allocation6 + $0x1d8] sm:$0xff]
    %v148 = vld [vmem:[#allocation6 + $0x1e0] sm:$0xff]
    %v149 = vld [vmem:[#allocation6 + $0x1e8] sm:$0xff]
    %v150 = vld [vmem:[#allocation6 + $0x1f0] sm:$0xff]
    %v151 = vld [vmem:[#allocation6 + $0x1f8] sm:$0xff]
    %v152 = vld [vmem:[#allocation6 + $0x200] sm:$0xff]
    %v153 = vld [vmem:[#allocation6 + $0x208] sm:$0xff]
    %v154 = vld [vmem:[#allocation6 + $0x210] sm:$0xff]
    %v155 = vld [vmem:[#allocation6 + $0x218] sm:$0xff]
    %v156 = vld [vmem:[#allocation6 + $0x220] sm:$0xff]
    %v157 = vld [vmem:[#allocation6 + $0x228] sm:$0xff]
    %v158 = vld [vmem:[#allocation6 + $0x230] sm:$0xff]
    %v159 = vld [vmem:[#allocation6 + $0x238] sm:$0xff]
    %v160 = vld [vmem:[#allocation6 + $0x240] sm:$0xff]
    %v161 = vld [vmem:[#allocation6 + $0x248] sm:$0xff]
    %v162 = vld [vmem:[#allocation6 + $0x250] sm:$0xff]
    %v163 = vld [vmem:[#allocation6 + $0x258] sm:$0xff]
    %v164 = vld [vmem:[#allocation6 + $0x260] sm:$0xff]
    %v165 = vld [vmem:[#allocation6 + $0x268] sm:$0xff]
    %v166 = vld [vmem:[#allocation6 + $0x270] sm:$0xff]
    %v167 = vld [vmem:[#allocation6 + $0x278] sm:$0xff]
    %v168 = vld [vmem:[#allocation6 + $0x280] sm:$0xff]
    %v169 = vld [vmem:[#allocation6 + $0x288] sm:$0xff]
    %v170 = vld [vmem:[#allocation6 + $0x290] sm:$0xff]
    %v171 = vld [vmem:[#allocation6 + $0x298] sm:$0xff]
    %v172 = vld [vmem:[#allocation6 + $0x2a0] sm:$0xff]
    %v173 = vld [vmem:[#allocation6 + $0x2a8] sm:$0xff]
    %v174 = vld [vmem:[#allocation6 + $0x2b0] sm:$0xff]
    %v175 = vld [vmem:[#allocation6 + $0x2b8] sm:$0xff]
    %v176 = vld [vmem:[#allocation6 + $0x2c0] sm:$0xff]
    %v177 = vld [vmem:[#allocation6 + $0x2c8] sm:$0xff]
    %v178 = vld [vmem:[#allocation6 + $0x2d0] sm:$0xff]
    %v179 = vld [vmem:[#allocation6 + $0x2d8] sm:$0xff]
    %v180 = vld [vmem:[#allocation6 + $0x2e0] sm:$0xff]
    %v181 = vld [vmem:[#allocation6 + $0x2e8] sm:$0xff]
    %v182 = vld [vmem:[#allocation6 + $0x2f0] sm:$0xff]
    %v183 = vld [vmem:[#allocation6 + $0x2f8] sm:$0xff]
    %v184 = vld [vmem:[#allocation6 + $0x300] sm:$0xff]
    %v185 = vld [vmem:[#allocation6 + $0x308] sm:$0xff]
    %v186 = vld [vmem:[#allocation6 + $0x310] sm:$0xff]
    %v187 = vld [vmem:[#allocation6 + $0x318] sm:$0xff]
    %v188 = vld [vmem:[#allocation6 + $0x320] sm:$0xff]
    %v189 = vld [vmem:[#allocation6 + $0x328] sm:$0xff]
    %v190 = vld [vmem:[#allocation6 + $0x330] sm:$0xff]
    %v191 = vld [vmem:[#allocation6 + $0x338] sm:$0xff]
    %v192 = vld [vmem:[#allocation6 + $0x340] sm:$0xff]
    %v193 = vld [vmem:[#allocation6 + $0x348] sm:$0xff]
    %v194 = vld [vmem:[#allocation6 + $0x350] sm:$0xff]
    %v195 = vld [vmem:[#allocation6 + $0x358] sm:$0xff]
    %v196 = vld [vmem:[#allocation6 + $0x360] sm:$0xff]
    %v197 = vld [vmem:[#allocation6 + $0x368] sm:$0xff]
    %v198 = vld [vmem:[#allocation6 + $0x370] sm:$0xff]
    %v199 = vld [vmem:[#allocation6 + $0x378] sm:$0xff]
    %v200 = vld [vmem:[#allocation6 + $0x380] sm:$0xff]
    %v201 = vld [vmem:[#allocation6 + $0x388] sm:$0xff]
    %v202 = vld [vmem:[#allocation6 + $0x390] sm:$0xff]
    %v203 = vld [vmem:[#allocation6 + $0x398] sm:$0xff]
    %v204 = vld [vmem:[#allocation6 + $0x3a0] sm:$0xff]
    %v205 = vld [vmem:[#allocation6 + $0x3a8] sm:$0xff]
    %v206 = vld [vmem:[#allocation6 + $0x3b0] sm:$0xff]
    %v207 = vld [vmem:[#allocation6 + $0x3b8] sm:$0xff]
    %v208 = vld [vmem:[#allocation6 + $0x3c0] sm:$0xff]
    %v209 = vld [vmem:[#allocation6 + $0x3c8] sm:$0xff]
    %v210 = vld [vmem:[#allocation6 + $0x3d0] sm:$0xff]
    %v211 = vld [vmem:[#allocation6 + $0x3d8] sm:$0xff]
    %v212 = vld [vmem:[#allocation6 + $0x3e0] sm:$0xff]
    %v213 = vld [vmem:[#allocation6 + $0x3e8] sm:$0xff]
    %v214 = vld [vmem:[#allocation6 + $0x3f0] sm:$0xff]
    %v215 = vld [vmem:[#allocation6 + $0x3f8] sm:$0xff]
    %v216 = vld [vmem:[#allocation6 + $0x400] sm:$0xff]
    %v217 = vld [vmem:[#allocation6 + $0x408] sm:$0xff]
    %v218 = vld [vmem:[#allocation6 + $0x410] sm:$0xff]
    %v219 = vld [vmem:[#allocation6 + $0x418] sm:$0xff]
    %v220 = vld [vmem:[#allocation6 + $0x420] sm:$0xff]
    %v221 = vld [vmem:[#allocation6 + $0x428] sm:$0xff]
    %v222 = vld [vmem:[#allocation6 + $0x430] sm:$0xff]
    %v223 = vld [vmem:[#allocation6 + $0x438] sm:$0xff]
    %v224 = vld [vmem:[#allocation6 + $0x440] sm:$0xff]
    %v225 = vld [vmem:[#allocation6 + $0x448] sm:$0xff]
    %v226 = vld [vmem:[#allocation6 + $0x450] sm:$0xff]
    %v227 = vld [vmem:[#allocation6 + $0x458] sm:$0xff]
    %v228 = vld [vmem:[#allocation6 + $0x460] sm:$0xff]
    %v229 = vld [vmem:[#allocation6 + $0x468] sm:$0xff]
    %v230 = vld [vmem:[#allocation6 + $0x470] sm:$0xff]
    %v231 = vld [vmem:[#allocation6 + $0x478] sm:$0xff]
    %v232 = vld [vmem:[#allocation6 + $0x480] sm:$0xff]
    %v233 = vld [vmem:[#allocation6 + $0x488] sm:$0xff]
    %v234 = vld [vmem:[#allocation6 + $0x490] sm:$0xff]
    %v235 = vld [vmem:[#allocation6 + $0x498] sm:$0xff]
    %v236 = vld [vmem:[#allocation6 + $0x4a0] sm:$0xff]
    %v237 = vld [vmem:[#allocation6 + $0x4a8] sm:$0xff]
    %v238 = vld [vmem:[#allocation6 + $0x4b0] sm:$0xff]
    %v239 = vld [vmem:[#allocation6 + $0x4b8] sm:$0xff]
    %v240 = vld [vmem:[#allocation6 + $0x4c0] sm:$0xff]
    %v241 = vld [vmem:[#allocation6 + $0x4c8] sm:$0xff]
    %v242 = vld [vmem:[#allocation6 + $0x4d0] sm:$0xff]
    %v243 = vld [vmem:[#allocation6 + $0x4d8] sm:$0xff]
    %v244 = vld [vmem:[#allocation6 + $0x4e0] sm:$0xff]
    %v245 = vld [vmem:[#allocation6 + $0x4e8] sm:$0xff]
    %v246 = vld [vmem:[#allocation6 + $0x4f0] sm:$0xff]
    %v247 = vld [vmem:[#allocation6 + $0x4f8] sm:$0xff]
    %v249 = vlaneseq
    %v250 = vshrl.u32 %v249, 7
    %v251 = vsub.s32 0, %v250
    %v252 = vrot.slane %v82, %v251
    %v253 = vlaneseq
    %v254 = vshrl.u32 %v253, 7
    %v255 = vsub.s32 1, %v254
    %v256 = vrot.slane %v82, %v255
    %v257 = vlaneseq
    %v258 = vshrl.u32 %v257, 7
    %v259 = vsub.s32 2, %v258
    %v260 = vrot.slane %v82, %v259
    %v261 = vlaneseq
    %v262 = vshrl.u32 %v261, 7
    %v263 = vsub.s32 3, %v262
    %v264 = vrot.slane %v82, %v263
    %v301 = vunpack.c.l.b16 %v88
    %v302 = vunpack.c.h.b16 %v88
    %v303 = vunpack.c.l.b16 %v89
    %v304 = vunpack.c.h.b16 %v89
    %v305 = vunpack.c.l.b16 %v90
    %v306 = vunpack.c.h.b16 %v90
    %v307 = vunpack.c.l.b16 %v91
    %v308 = vunpack.c.h.b16 %v91
    %v309 = vunpack.c.l.b16 %v92
    %v310 = vunpack.c.h.b16 %v92
    %v311 = vunpack.c.l.b16 %v93
    %v312 = vunpack.c.h.b16 %v93
    %v313 = vunpack.c.l.b16 %v94
    %v314 = vunpack.c.h.b16 %v94
    %v315 = vunpack.c.l.b16 %v95
    %v316 = vunpack.c.h.b16 %v95
    %v317 = vunpack.c.l.b16 %v96
    %v318 = vunpack.c.h.b16 %v96
    %v319 = vunpack.c.l.b16 %v97
    %v320 = vunpack.c.h.b16 %v97
    %v321 = vunpack.c.l.b16 %v98
    %v322 = vunpack.c.h.b16 %v98
    %v323 = vunpack.c.l.b16 %v99
    %v324 = vunpack.c.h.b16 %v99
    %v325 = vunpack.c.l.b16 %v100
    %v326 = vunpack.c.h.b16 %v100
    %v327 = vunpack.c.l.b16 %v101
    %v328 = vunpack.c.h.b16 %v101
    %v329 = vunpack.c.l.b16 %v102
    %v330 = vunpack.c.h.b16 %v102
    %v331 = vunpack.c.l.b16 %v103
    %v332 = vunpack.c.h.b16 %v103
    %v333 = vunpack.c.l.b16 %v104
    %v334 = vunpack.c.h.b16 %v104
    %v335 = vunpack.c.l.b16 %v105
    %v336 = vunpack.c.h.b16 %v105
    %v337 = vunpack.c.l.b16 %v106
    %v338 = vunpack.c.h.b16 %v106
    %v339 = vunpack.c.l.b16 %v107
    %v340 = vunpack.c.h.b16 %v107
    %v341 = vunpack.c.l.b16 %v108
    %v342 = vunpack.c.h.b16 %v108
    %v343 = vunpack.c.l.b16 %v109
    %v344 = vunpack.c.h.b16 %v109
    %v345 = vunpack.c.l.b16 %v110
    %v346 = vunpack.c.h.b16 %v110
    %v347 = vunpack.c.l.b16 %v111
    %v348 = vunpack.c.h.b16 %v111
    %v349 = vunpack.c.l.b16 %v112
    %v350 = vunpack.c.h.b16 %v112
    %v351 = vunpack.c.l.b16 %v113
    %v352 = vunpack.c.h.b16 %v113
    %v353 = vunpack.c.l.b16 %v114
    %v354 = vunpack.c.h.b16 %v114
    %v355 = vunpack.c.l.b16 %v115
    %v356 = vunpack.c.h.b16 %v115
    %v357 = vunpack.c.l.b16 %v116
    %v358 = vunpack.c.h.b16 %v116
    %v359 = vunpack.c.l.b16 %v117
    %v360 = vunpack.c.h.b16 %v117
    %v361 = vunpack.c.l.b16 %v118
    %v362 = vunpack.c.h.b16 %v118
    %v363 = vunpack.c.l.b16 %v119
    %v364 = vunpack.c.h.b16 %v119
    %v365 = vpack.c.b16 %v305, %v301
    %v366 = vpack.c.b16 %v306, %v302
    %v367 = vpack.c.b16 %v307, %v303
    %v368 = vpack.c.b16 %v308, %v304
    %v369 = vpack.c.b16 %v313, %v309
    %v370 = vpack.c.b16 %v314, %v310
    %v371 = vpack.c.b16 %v315, %v311
    %v372 = vpack.c.b16 %v316, %v312
    %v373 = vpack.c.b16 %v321, %v317
    %v374 = vpack.c.b16 %v322, %v318
    %v375 = vpack.c.b16 %v323, %v319
    %v376 = vpack.c.b16 %v324, %v320
    %v377 = vpack.c.b16 %v329, %v325
    %v378 = vpack.c.b16 %v330, %v326
    %v379 = vpack.c.b16 %v331, %v327
    %v380 = vpack.c.b16 %v332, %v328
    %v381 = vpack.c.b16 %v337, %v333
    %v382 = vpack.c.b16 %v338, %v334
    %v383 = vpack.c.b16 %v339, %v335
    %v384 = vpack.c.b16 %v340, %v336
    %v385 = vpack.c.b16 %v345, %v341
    %v386 = vpack.c.b16 %v346, %v342
    %v387 = vpack.c.b16 %v347, %v343
    %v388 = vpack.c.b16 %v348, %v344
    %v389 = vpack.c.b16 %v353, %v349
    %v390 = vpack.c.b16 %v354, %v350
    %v391 = vpack.c.b16 %v355, %v351
    %v392 = vpack.c.b16 %v356, %v352
    %v393 = vpack.c.b16 %v361, %v357
    %v394 = vpack.c.b16 %v362, %v358
    %v395 = vpack.c.b16 %v363, %v359
    %v396 = vpack.c.b16 %v364, %v360
    %429 = vmatprep.subr.bf16.mxu0 %v394
    %430 = vmatpush1.bf16.msra.mxu0 %v393
    %431 = vmatprep.subr.bf16.mxu0 %v390
    %432 = vmatpush1.bf16.msra.mxu0 %v389
    %433 = vmatprep.subr.bf16.mxu0 %v386
    %434 = vmatpush1.bf16.msra.mxu0 %v385
    %435 = vmatprep.subr.bf16.mxu0 %v382
    %436 = vmatpush1.bf16.msra.mxu0 %v381
    %437 = vmatprep.subr.bf16.mxu0 %v378
    %438 = vmatpush1.bf16.msra.mxu0 %v377
    %439 = vmatprep.subr.bf16.mxu0 %v374
    %440 = vmatpush1.bf16.msra.mxu0 %v373
    %441 = vmatprep.subr.bf16.mxu0 %v370
    %442 = vmatpush1.bf16.msra.mxu0 %v369
    %443 = vmatprep.subr.bf16.mxu0 %v366
    %444 = vmatpush1.bf16.msra.mxu0 %v365
    %445 = vmatprep.subr.bf16.mxu0 0
    %446 = vmatpush2.bf16.msra.mxu0 0
    %447 = vmatprep.subr.bf16.mxu0 0
    %448 = vmatpush2.bf16.msra.mxu0 0
    %449 = vmatprep.subr.bf16.mxu0 0
    %450 = vmatpush2.bf16.msra.mxu0 0
    %451 = vmatprep.subr.bf16.mxu0 0
    %452 = vmatpush2.bf16.msra.mxu0 0
    %453 = vmatprep.subr.bf16.mxu0 0
    %454 = vmatpush2.bf16.msra.mxu0 0
    %455 = vmatprep.subr.bf16.mxu0 0
    %456 = vmatpush2.bf16.msra.mxu0 0
    %457 = vmatprep.subr.bf16.mxu0 0
    %458 = vmatpush2.bf16.msra.mxu0 0
    %459 = vmatprep.subr.bf16.mxu0 0
    %460 = vmatpush2.bf16.msra.mxu0 0
    %461 = vmatprep.mubr.bf16.mxu0 0
    %462 = vmatmul.mubr.bf16.gmra.mxu0 %v81
    %v463 = vpop.f32.mrf.mxu0
    %v464 = vadd.f32 %v252, %v463
    %v465 = vpop.f32.mrf.mxu0
    %v466 = vadd.f32 %v256, %v465
    %v467 = vpop.f32.mrf.mxu0
    %v468 = vadd.f32 %v252, %v467
    %v469 = vpop.f32.mrf.mxu0
    %v470 = vadd.f32 %v256, %v469
    %471 = vdwg.mxu0
    %472 = vmatprep.subr.bf16.mxu0 %v396
    %473 = vmatpush1.bf16.msra.mxu0 %v395
    %474 = vmatprep.subr.bf16.mxu0 %v392
    %475 = vmatpush1.bf16.msra.mxu0 %v391
    %476 = vmatprep.subr.bf16.mxu0 %v388
    %477 = vmatpush1.bf16.msra.mxu0 %v387
    %478 = vmatprep.subr.bf16.mxu0 %v384
    %479 = vmatpush1.bf16.msra.mxu0 %v383
    %480 = vmatprep.subr.bf16.mxu0 %v380
    %481 = vmatpush1.bf16.msra.mxu0 %v379
    %482 = vmatprep.subr.bf16.mxu0 %v376
    %483 = vmatpush1.bf16.msra.mxu0 %v375
    %484 = vmatprep.subr.bf16.mxu0 %v372
    %485 = vmatpush1.bf16.msra.mxu0 %v371
    %486 = vmatprep.subr.bf16.mxu0 %v368
    %487 = vmatpush1.bf16.msra.mxu0 %v367
    %488 = vmatprep.subr.bf16.mxu0 0
    %489 = vmatpush2.bf16.msra.mxu0 0
    %490 = vmatprep.subr.bf16.mxu0 0
    %491 = vmatpush2.bf16.msra.mxu0 0
    %492 = vmatprep.subr.bf16.mxu0 0
    %493 = vmatpush2.bf16.msra.mxu0 0
    %494 = vmatprep.subr.bf16.mxu0 0
    %495 = vmatpush2.bf16.msra.mxu0 0
    %496 = vmatprep.subr.bf16.mxu0 0
    %497 = vmatpush2.bf16.msra.mxu0 0
    %498 = vmatprep.subr.bf16.mxu0 0
    %499 = vmatpush2.bf16.msra.mxu0 0
    %500 = vmatprep.subr.bf16.mxu0 0
    %501 = vmatpush2.bf16.msra.mxu0 0
    %502 = vmatprep.subr.bf16.mxu0 0
    %503 = vmatpush2.bf16.msra.mxu0 0
    %504 = vmatprep.mubr.bf16.mxu0 0
    %505 = vmatmul.mubr.bf16.gmra.mxu0 %v81
    %v506 = vpop.f32.mrf.mxu0
    %v507 = vadd.f32 %v260, %v506
    %v508 = vpop.f32.mrf.mxu0
    %v509 = vadd.f32 %v264, %v508
    %v510 = vpop.f32.mrf.mxu0
    %v511 = vadd.f32 %v260, %v510
    %v512 = vpop.f32.mrf.mxu0
    %v513 = vadd.f32 %v264, %v512
    %514 = vdwg.mxu0
    %v515 = vmax.f32 %v464, 0.0
    %v516 = vmax.f32 %v466, 0.0
    %v517 = vmax.f32 %v507, 0.0
    %v518 = vmax.f32 %v509, 0.0
    %v519 = vmax.f32 %v468, 0.0
    %v520 = vmax.f32 %v470, 0.0
    %v521 = vmax.f32 %v511, 0.0
    %v522 = vmax.f32 %v513, 0.0
    %v523 = vpack.c.bf16 %v519, %v515
    %v524 = vpack.c.bf16 %v520, %v516
    %v525 = vpack.c.bf16 %v521, %v517
    %v526 = vpack.c.bf16 %v522, %v518
    %v655 = vunpack.c.l.b16 %v120
    %v656 = vunpack.c.h.b16 %v120
    %v657 = vunpack.c.l.b16 %v121
    %v658 = vunpack.c.h.b16 %v121
    %v659 = vunpack.c.l.b16 %v122
    %v660 = vunpack.c.h.b16 %v122
    %v661 = vunpack.c.l.b16 %v123
    %v662 = vunpack.c.h.b16 %v123
    %v663 = vunpack.c.l.b16 %v124
    %v664 = vunpack.c.h.b16 %v124
    %v665 = vunpack.c.l.b16 %v125
    %v666 = vunpack.c.h.b16 %v125
    %v667 = vunpack.c.l.b16 %v126
    %v668 = vunpack.c.h.b16 %v126
    %v669 = vunpack.c.l.b16 %v127
    %v670 = vunpack.c.h.b16 %v127
    %v671 = vunpack.c.l.b16 %v128
    %v672 = vunpack.c.h.b16 %v128
    %v673 = vunpack.c.l.b16 %v129
    %v674 = vunpack.c.h.b16 %v129
    %v675 = vunpack.c.l.b16 %v130
    %v676 = vunpack.c.h.b16 %v130
    %v677 = vunpack.c.l.b16 %v131
    %v678 = vunpack.c.h.b16 %v131
    %v679 = vunpack.c.l.b16 %v132
    %v680 = vunpack.c.h.b16 %v132
    %v681 = vunpack.c.l.b16 %v133
    %v682 = vunpack.c.h.b16 %v133
    %v683 = vunpack.c.l.b16 %v134
    %v684 = vunpack.c.h.b16 %v134
    %v685 = vunpack.c.l.b16 %v135
    %v686 = vunpack.c.h.b16 %v135
    %v687 = vunpack.c.l.b16 %v136
    %v688 = vunpack.c.h.b16 %v136
    %v689 = vunpack.c.l.b16 %v137
    %v690 = vunpack.c.h.b16 %v137
    %v691 = vunpack.c.l.b16 %v138
    %v692 = vunpack.c.h.b16 %v138
    %v693 = vunpack.c.l.b16 %v139
    %v694 = vunpack.c.h.b16 %v139
    %v695 = vunpack.c.l.b16 %v140
    %v696 = vunpack.c.h.b16 %v140
    %v697 = vunpack.c.l.b16 %v141
    %v698 = vunpack.c.h.b16 %v141
    %v699 = vunpack.c.l.b16 %v142
    %v700 = vunpack.c.h.b16 %v142
    %v701 = vunpack.c.l.b16 %v143
    %v702 = vunpack.c.h.b16 %v143
    %v703 = vunpack.c.l.b16 %v144
    %v704 = vunpack.c.h.b16 %v144
    %v705 = vunpack.c.l.b16 %v145
    %v706 = vunpack.c.h.b16 %v145
    %v707 = vunpack.c.l.b16 %v146
    %v708 = vunpack.c.h.b16 %v146
    %v709 = vunpack.c.l.b16 %v147
    %v710 = vunpack.c.h.b16 %v147
    %v711 = vunpack.c.l.b16 %v148
    %v712 = vunpack.c.h.b16 %v148
    %v713 = vunpack.c.l.b16 %v149
    %v714 = vunpack.c.h.b16 %v149
    %v715 = vunpack.c.l.b16 %v150
    %v716 = vunpack.c.h.b16 %v150
    %v717 = vunpack.c.l.b16 %v151
    %v718 = vunpack.c.h.b16 %v151
    %v719 = vunpack.c.l.b16 %v152
    %v720 = vunpack.c.h.b16 %v152
    %v721 = vunpack.c.l.b16 %v153
    %v722 = vunpack.c.h.b16 %v153
    %v723 = vunpack.c.l.b16 %v154
    %v724 = vunpack.c.h.b16 %v154
    %v725 = vunpack.c.l.b16 %v155
    %v726 = vunpack.c.h.b16 %v155
    %v727 = vunpack.c.l.b16 %v156
    %v728 = vunpack.c.h.b16 %v156
    %v729 = vunpack.c.l.b16 %v157
    %v730 = vunpack.c.h.b16 %v157
    %v731 = vunpack.c.l.b16 %v158
    %v732 = vunpack.c.h.b16 %v158
    %v733 = vunpack.c.l.b16 %v159
    %v734 = vunpack.c.h.b16 %v159
    %v735 = vunpack.c.l.b16 %v160
    %v736 = vunpack.c.h.b16 %v160
    %v737 = vunpack.c.l.b16 %v161
    %v738 = vunpack.c.h.b16 %v161
    %v739 = vunpack.c.l.b16 %v162
    %v740 = vunpack.c.h.b16 %v162
    %v741 = vunpack.c.l.b16 %v163
    %v742 = vunpack.c.h.b16 %v163
    %v743 = vunpack.c.l.b16 %v164
    %v744 = vunpack.c.h.b16 %v164
    %v745 = vunpack.c.l.b16 %v165
    %v746 = vunpack.c.h.b16 %v165
    %v747 = vunpack.c.l.b16 %v166
    %v748 = vunpack.c.h.b16 %v166
    %v749 = vunpack.c.l.b16 %v167
    %v750 = vunpack.c.h.b16 %v167
    %v751 = vunpack.c.l.b16 %v168
    %v752 = vunpack.c.h.b16 %v168
    %v753 = vunpack.c.l.b16 %v169
    %v754 = vunpack.c.h.b16 %v169
    %v755 = vunpack.c.l.b16 %v170
    %v756 = vunpack.c.h.b16 %v170
    %v757 = vunpack.c.l.b16 %v171
    %v758 = vunpack.c.h.b16 %v171
    %v759 = vunpack.c.l.b16 %v172
    %v760 = vunpack.c.h.b16 %v172
    %v761 = vunpack.c.l.b16 %v173
    %v762 = vunpack.c.h.b16 %v173
    %v763 = vunpack.c.l.b16 %v174
    %v764 = vunpack.c.h.b16 %v174
    %v765 = vunpack.c.l.b16 %v175
    %v766 = vunpack.c.h.b16 %v175
    %v767 = vunpack.c.l.b16 %v176
    %v768 = vunpack.c.h.b16 %v176
    %v769 = vunpack.c.l.b16 %v177
    %v770 = vunpack.c.h.b16 %v177
    %v771 = vunpack.c.l.b16 %v178
    %v772 = vunpack.c.h.b16 %v178
    %v773 = vunpack.c.l.b16 %v179
    %v774 = vunpack.c.h.b16 %v179
    %v775 = vunpack.c.l.b16 %v180
    %v776 = vunpack.c.h.b16 %v180
    %v777 = vunpack.c.l.b16 %v181
    %v778 = vunpack.c.h.b16 %v181
    %v779 = vunpack.c.l.b16 %v182
    %v780 = vunpack.c.h.b16 %v182
    %v781 = vunpack.c.l.b16 %v183
    %v782 = vunpack.c.h.b16 %v183
    %v783 = vunpack.c.l.b16 %v184
    %v784 = vunpack.c.h.b16 %v184
    %v785 = vunpack.c.l.b16 %v185
    %v786 = vunpack.c.h.b16 %v185
    %v787 = vunpack.c.l.b16 %v186
    %v788 = vunpack.c.h.b16 %v186
    %v789 = vunpack.c.l.b16 %v187
    %v790 = vunpack.c.h.b16 %v187
    %v791 = vunpack.c.l.b16 %v188
    %v792 = vunpack.c.h.b16 %v188
    %v793 = vunpack.c.l.b16 %v189
    %v794 = vunpack.c.h.b16 %v189
    %v795 = vunpack.c.l.b16 %v190
    %v796 = vunpack.c.h.b16 %v190
    %v797 = vunpack.c.l.b16 %v191
    %v798 = vunpack.c.h.b16 %v191
    %v799 = vunpack.c.l.b16 %v192
    %v800 = vunpack.c.h.b16 %v192
    %v801 = vunpack.c.l.b16 %v193
    %v802 = vunpack.c.h.b16 %v193
    %v803 = vunpack.c.l.b16 %v194
    %v804 = vunpack.c.h.b16 %v194
    %v805 = vunpack.c.l.b16 %v195
    %v806 = vunpack.c.h.b16 %v195
    %v807 = vunpack.c.l.b16 %v196
    %v808 = vunpack.c.h.b16 %v196
    %v809 = vunpack.c.l.b16 %v197
    %v810 = vunpack.c.h.b16 %v197
    %v811 = vunpack.c.l.b16 %v198
    %v812 = vunpack.c.h.b16 %v198
    %v813 = vunpack.c.l.b16 %v199
    %v814 = vunpack.c.h.b16 %v199
    %v815 = vunpack.c.l.b16 %v200
    %v816 = vunpack.c.h.b16 %v200
    %v817 = vunpack.c.l.b16 %v201
    %v818 = vunpack.c.h.b16 %v201
    %v819 = vunpack.c.l.b16 %v202
    %v820 = vunpack.c.h.b16 %v202
    %v821 = vunpack.c.l.b16 %v203
    %v822 = vunpack.c.h.b16 %v203
    %v823 = vunpack.c.l.b16 %v204
    %v824 = vunpack.c.h.b16 %v204
    %v825 = vunpack.c.l.b16 %v205
    %v826 = vunpack.c.h.b16 %v205
    %v827 = vunpack.c.l.b16 %v206
    %v828 = vunpack.c.h.b16 %v206
    %v829 = vunpack.c.l.b16 %v207
    %v830 = vunpack.c.h.b16 %v207
    %v831 = vunpack.c.l.b16 %v208
    %v832 = vunpack.c.h.b16 %v208
    %v833 = vunpack.c.l.b16 %v209
    %v834 = vunpack.c.h.b16 %v209
    %v835 = vunpack.c.l.b16 %v210
    %v836 = vunpack.c.h.b16 %v210
    %v837 = vunpack.c.l.b16 %v211
    %v838 = vunpack.c.h.b16 %v211
    %v839 = vunpack.c.l.b16 %v212
    %v840 = vunpack.c.h.b16 %v212
    %v841 = vunpack.c.l.b16 %v213
    %v842 = vunpack.c.h.b16 %v213
    %v843 = vunpack.c.l.b16 %v214
    %v844 = vunpack.c.h.b16 %v214
    %v845 = vunpack.c.l.b16 %v215
    %v846 = vunpack.c.h.b16 %v215
    %v847 = vunpack.c.l.b16 %v216
    %v848 = vunpack.c.h.b16 %v216
    %v849 = vunpack.c.l.b16 %v217
    %v850 = vunpack.c.h.b16 %v217
    %v851 = vunpack.c.l.b16 %v218
    %v852 = vunpack.c.h.b16 %v218
    %v853 = vunpack.c.l.b16 %v219
    %v854 = vunpack.c.h.b16 %v219
    %v855 = vunpack.c.l.b16 %v220
    %v856 = vunpack.c.h.b16 %v220
    %v857 = vunpack.c.l.b16 %v221
    %v858 = vunpack.c.h.b16 %v221
    %v859 = vunpack.c.l.b16 %v222
    %v860 = vunpack.c.h.b16 %v222
    %v861 = vunpack.c.l.b16 %v223
    %v862 = vunpack.c.h.b16 %v223
    %v863 = vunpack.c.l.b16 %v224
    %v864 = vunpack.c.h.b16 %v224
    %v865 = vunpack.c.l.b16 %v225
    %v866 = vunpack.c.h.b16 %v225
    %v867 = vunpack.c.l.b16 %v226
    %v868 = vunpack.c.h.b16 %v226
    %v869 = vunpack.c.l.b16 %v227
    %v870 = vunpack.c.h.b16 %v227
    %v871 = vunpack.c.l.b16 %v228
    %v872 = vunpack.c.h.b16 %v228
    %v873 = vunpack.c.l.b16 %v229
    %v874 = vunpack.c.h.b16 %v229
    %v875 = vunpack.c.l.b16 %v230
    %v876 = vunpack.c.h.b16 %v230
    %v877 = vunpack.c.l.b16 %v231
    %v878 = vunpack.c.h.b16 %v231
    %v879 = vunpack.c.l.b16 %v232
    %v880 = vunpack.c.h.b16 %v232
    %v881 = vunpack.c.l.b16 %v233
    %v882 = vunpack.c.h.b16 %v233
    %v883 = vunpack.c.l.b16 %v234
    %v884 = vunpack.c.h.b16 %v234
    %v885 = vunpack.c.l.b16 %v235
    %v886 = vunpack.c.h.b16 %v235
    %v887 = vunpack.c.l.b16 %v236
    %v888 = vunpack.c.h.b16 %v236
    %v889 = vunpack.c.l.b16 %v237
    %v890 = vunpack.c.h.b16 %v237
    %v891 = vunpack.c.l.b16 %v238
    %v892 = vunpack.c.h.b16 %v238
    %v893 = vunpack.c.l.b16 %v239
    %v894 = vunpack.c.h.b16 %v239
    %v895 = vunpack.c.l.b16 %v240
    %v896 = vunpack.c.h.b16 %v240
    %v897 = vunpack.c.l.b16 %v241
    %v898 = vunpack.c.h.b16 %v241
    %v899 = vunpack.c.l.b16 %v242
    %v900 = vunpack.c.h.b16 %v242
    %v901 = vunpack.c.l.b16 %v243
    %v902 = vunpack.c.h.b16 %v243
    %v903 = vunpack.c.l.b16 %v244
    %v904 = vunpack.c.h.b16 %v244
    %v905 = vunpack.c.l.b16 %v245
    %v906 = vunpack.c.h.b16 %v245
    %v907 = vunpack.c.l.b16 %v246
    %v908 = vunpack.c.h.b16 %v246
    %v909 = vunpack.c.l.b16 %v247
    %v910 = vunpack.c.h.b16 %v247
    %v911 = vpack.c.b16 %v659, %v655
    %v912 = vpack.c.b16 %v660, %v656
    %v913 = vpack.c.b16 %v661, %v657
    %v914 = vpack.c.b16 %v662, %v658
    %v915 = vpack.c.b16 %v667, %v663
    %v916 = vpack.c.b16 %v668, %v664
    %v917 = vpack.c.b16 %v669, %v665
    %v918 = vpack.c.b16 %v670, %v666
    %v919 = vpack.c.b16 %v675, %v671
    %v920 = vpack.c.b16 %v676, %v672
    %v921 = vpack.c.b16 %v677, %v673
    %v922 = vpack.c.b16 %v678, %v674
    %v923 = vpack.c.b16 %v683, %v679
    %v924 = vpack.c.b16 %v684, %v680
    %v925 = vpack.c.b16 %v685, %v681
    %v926 = vpack.c.b16 %v686, %v682
    %v927 = vpack.c.b16 %v691, %v687
    %v928 = vpack.c.b16 %v692, %v688
    %v929 = vpack.c.b16 %v693, %v689
    %v930 = vpack.c.b16 %v694, %v690
    %v931 = vpack.c.b16 %v699, %v695
    %v932 = vpack.c.b16 %v700, %v696
    %v933 = vpack.c.b16 %v701, %v697
    %v934 = vpack.c.b16 %v702, %v698
    %v935 = vpack.c.b16 %v707, %v703
    %v936 = vpack.c.b16 %v708, %v704
    %v937 = vpack.c.b16 %v709, %v705
    %v938 = vpack.c.b16 %v710, %v706
    %v939 = vpack.c.b16 %v715, %v711
    %v940 = vpack.c.b16 %v716, %v712
    %v941 = vpack.c.b16 %v717, %v713
    %v942 = vpack.c.b16 %v718, %v714
    %v943 = vpack.c.b16 %v723, %v719
    %v944 = vpack.c.b16 %v724, %v720
    %v945 = vpack.c.b16 %v725, %v721
    %v946 = vpack.c.b16 %v726, %v722
    %v947 = vpack.c.b16 %v731, %v727
    %v948 = vpack.c.b16 %v732, %v728
    %v949 = vpack.c.b16 %v733, %v729
    %v950 = vpack.c.b16 %v734, %v730
    %v951 = vpack.c.b16 %v739, %v735
    %v952 = vpack.c.b16 %v740, %v736
    %v953 = vpack.c.b16 %v741, %v737
    %v954 = vpack.c.b16 %v742, %v738
    %v955 = vpack.c.b16 %v747, %v743
    %v956 = vpack.c.b16 %v748, %v744
    %v957 = vpack.c.b16 %v749, %v745
    %v958 = vpack.c.b16 %v750, %v746
    %v959 = vpack.c.b16 %v755, %v751
    %v960 = vpack.c.b16 %v756, %v752
    %v961 = vpack.c.b16 %v757, %v753
    %v962 = vpack.c.b16 %v758, %v754
    %v963 = vpack.c.b16 %v763, %v759
    %v964 = vpack.c.b16 %v764, %v760
    %v965 = vpack.c.b16 %v765, %v761
    %v966 = vpack.c.b16 %v766, %v762
    %v967 = vpack.c.b16 %v771, %v767
    %v968 = vpack.c.b16 %v772, %v768
    %v969 = vpack.c.b16 %v773, %v769
    %v970 = vpack.c.b16 %v774, %v770
    %v971 = vpack.c.b16 %v779, %v775
    %v972 = vpack.c.b16 %v780, %v776
    %v973 = vpack.c.b16 %v781, %v777
    %v974 = vpack.c.b16 %v782, %v778
    %v975 = vpack.c.b16 %v787, %v783
    %v976 = vpack.c.b16 %v788, %v784
    %v977 = vpack.c.b16 %v789, %v785
    %v978 = vpack.c.b16 %v790, %v786
    %v979 = vpack.c.b16 %v795, %v791
    %v980 = vpack.c.b16 %v796, %v792
    %v981 = vpack.c.b16 %v797, %v793
    %v982 = vpack.c.b16 %v798, %v794
    %v983 = vpack.c.b16 %v803, %v799
    %v984 = vpack.c.b16 %v804, %v800
    %v985 = vpack.c.b16 %v805, %v801
    %v986 = vpack.c.b16 %v806, %v802
    %v987 = vpack.c.b16 %v811, %v807
    %v988 = vpack.c.b16 %v812, %v808
    %v989 = vpack.c.b16 %v813, %v809
    %v990 = vpack.c.b16 %v814, %v810
    %v991 = vpack.c.b16 %v819, %v815
    %v992 = vpack.c.b16 %v820, %v816
    %v993 = vpack.c.b16 %v821, %v817
    %v994 = vpack.c.b16 %v822, %v818
    %v995 = vpack.c.b16 %v827, %v823
    %v996 = vpack.c.b16 %v828, %v824
    %v997 = vpack.c.b16 %v829, %v825
    %v998 = vpack.c.b16 %v830, %v826
    %v999 = vpack.c.b16 %v835, %v831
    %v1000 = vpack.c.b16 %v836, %v832
    %v1001 = vpack.c.b16 %v837, %v833
    %v1002 = vpack.c.b16 %v838, %v834
    %v1003 = vpack.c.b16 %v843, %v839
    %v1004 = vpack.c.b16 %v844, %v840
    %v1005 = vpack.c.b16 %v845, %v841
    %v1006 = vpack.c.b16 %v846, %v842
    %v1007 = vpack.c.b16 %v851, %v847
    %v1008 = vpack.c.b16 %v852, %v848
    %v1009 = vpack.c.b16 %v853, %v849
    %v1010 = vpack.c.b16 %v854, %v850
    %v1011 = vpack.c.b16 %v859, %v855
    %v1012 = vpack.c.b16 %v860, %v856
    %v1013 = vpack.c.b16 %v861, %v857
    %v1014 = vpack.c.b16 %v862, %v858
    %v1015 = vpack.c.b16 %v867, %v863
    %v1016 = vpack.c.b16 %v868, %v864
    %v1017 = vpack.c.b16 %v869, %v865
    %v1018 = vpack.c.b16 %v870, %v866
    %v1019 = vpack.c.b16 %v875, %v871
    %v1020 = vpack.c.b16 %v876, %v872
    %v1021 = vpack.c.b16 %v877, %v873
    %v1022 = vpack.c.b16 %v878, %v874
    %v1023 = vpack.c.b16 %v883, %v879
    %v1024 = vpack.c.b16 %v884, %v880
    %v1025 = vpack.c.b16 %v885, %v881
    %v1026 = vpack.c.b16 %v886, %v882
    %v1027 = vpack.c.b16 %v891, %v887
    %v1028 = vpack.c.b16 %v892, %v888
    %v1029 = vpack.c.b16 %v893, %v889
    %v1030 = vpack.c.b16 %v894, %v890
    %v1031 = vpack.c.b16 %v899, %v895
    %v1032 = vpack.c.b16 %v900, %v896
    %v1033 = vpack.c.b16 %v901, %v897
    %v1034 = vpack.c.b16 %v902, %v898
    %v1035 = vpack.c.b16 %v907, %v903
    %v1036 = vpack.c.b16 %v908, %v904
    %v1037 = vpack.c.b16 %v909, %v905
    %v1038 = vpack.c.b16 %v910, %v906
    %1167 = vmatprep.subr.bf16.mxu0 %v940
    %1168 = vmatpush1.bf16.msra.mxu0 %v939
    %1169 = vmatprep.subr.bf16.mxu0 %v936
    %1170 = vmatpush1.bf16.msra.mxu0 %v935
    %1171 = vmatprep.subr.bf16.mxu0 %v932
    %1172 = vmatpush1.bf16.msra.mxu0 %v931
    %1173 = vmatprep.subr.bf16.mxu0 %v928
    %1174 = vmatpush1.bf16.msra.mxu0 %v927
    %1175 = vmatprep.subr.bf16.mxu0 %v924
    %1176 = vmatpush1.bf16.msra.mxu0 %v923
    %1177 = vmatprep.subr.bf16.mxu0 %v920
    %1178 = vmatpush1.bf16.msra.mxu0 %v919
    %1179 = vmatprep.subr.bf16.mxu0 %v916
    %1180 = vmatpush1.bf16.msra.mxu0 %v915
    %1181 = vmatprep.subr.bf16.mxu0 %v912
    %1182 = vmatpush1.bf16.msra.mxu0 %v911
    %1183 = vmatprep.subr.bf16.mxu0 %v972
    %1184 = vmatpush2.bf16.msra.mxu0 %v971
    %1185 = vmatprep.subr.bf16.mxu0 %v968
    %1186 = vmatpush2.bf16.msra.mxu0 %v967
    %1187 = vmatprep.subr.bf16.mxu0 %v964
    %1188 = vmatpush2.bf16.msra.mxu0 %v963
    %1189 = vmatprep.subr.bf16.mxu0 %v960
    %1190 = vmatpush2.bf16.msra.mxu0 %v959
    %1191 = vmatprep.subr.bf16.mxu0 %v956
    %1192 = vmatpush2.bf16.msra.mxu0 %v955
    %1193 = vmatprep.subr.bf16.mxu0 %v952
    %1194 = vmatpush2.bf16.msra.mxu0 %v951
    %1195 = vmatprep.subr.bf16.mxu0 %v948
    %1196 = vmatpush2.bf16.msra.mxu0 %v947
    %1197 = vmatprep.subr.bf16.mxu0 %v944
    %1198 = vmatpush2.bf16.msra.mxu0 %v943
    %1199 = vmatprep.mubr.bf16.mxu0 %v524
    %1200 = vmatmul.mubr.bf16.gmra.mxu0 %v523
    %v1201 = vpop.f32.mrf.mxu0
    %v1202 = vadd.f32 0.0, %v1201
    %v1203 = vpop.f32.mrf.mxu0
    %v1204 = vadd.f32 0.0, %v1203
    %v1205 = vpop.f32.mrf.mxu0
    %v1206 = vadd.f32 0.0, %v1205
    %v1207 = vpop.f32.mrf.mxu0
    %v1208 = vadd.f32 0.0, %v1207
    %1209 = vdwg.mxu0
    %1210 = vmatprep.subr.bf16.mxu0 %v1004
    %1211 = vmatpush1.bf16.msra.mxu0 %v1003
    %1212 = vmatprep.subr.bf16.mxu0 %v1000
    %1213 = vmatpush1.bf16.msra.mxu0 %v999
    %1214 = vmatprep.subr.bf16.mxu0 %v996
    %1215 = vmatpush1.bf16.msra.mxu0 %v995
    %1216 = vmatprep.subr.bf16.mxu0 %v992
    %1217 = vmatpush1.bf16.msra.mxu0 %v991
    %1218 = vmatprep.subr.bf16.mxu0 %v988
    %1219 = vmatpush1.bf16.msra.mxu0 %v987
    %1220 = vmatprep.subr.bf16.mxu0 %v984
    %1221 = vmatpush1.bf16.msra.mxu0 %v983
    %1222 = vmatprep.subr.bf16.mxu0 %v980
    %1223 = vmatpush1.bf16.msra.mxu0 %v979
    %1224 = vmatprep.subr.bf16.mxu0 %v976
    %1225 = vmatpush1.bf16.msra.mxu0 %v975
    %1226 = vmatprep.subr.bf16.mxu0 %v1036
    %1227 = vmatpush2.bf16.msra.mxu0 %v1035
    %1228 = vmatprep.subr.bf16.mxu0 %v1032
    %1229 = vmatpush2.bf16.msra.mxu0 %v1031
    %1230 = vmatprep.subr.bf16.mxu0 %v1028
    %1231 = vmatpush2.bf16.msra.mxu0 %v1027
    %1232 = vmatprep.subr.bf16.mxu0 %v1024
    %1233 = vmatpush2.bf16.msra.mxu0 %v1023
    %1234 = vmatprep.subr.bf16.mxu0 %v1020
    %1235 = vmatpush2.bf16.msra.mxu0 %v1019
    %1236 = vmatprep.subr.bf16.mxu0 %v1016
    %1237 = vmatpush2.bf16.msra.mxu0 %v1015
    %1238 = vmatprep.subr.bf16.mxu0 %v1012
    %1239 = vmatpush2.bf16.msra.mxu0 %v1011
    %1240 = vmatprep.subr.bf16.mxu0 %v1008
    %1241 = vmatpush2.bf16.msra.mxu0 %v1007
    %1242 = vmatprep.mubr.bf16.mxu0 %v526
    %1243 = vmatmul.mubr.bf16.gmra.mxu0 %v525
    %v1244 = vpop.f32.mrf.mxu0
    %v1245 = vadd.f32 %v1202, %v1244
    %v1246 = vpop.f32.mrf.mxu0
    %v1247 = vadd.f32 %v1204, %v1246
    %v1248 = vpop.f32.mrf.mxu0
    %v1249 = vadd.f32 %v1206, %v1248
    %v1250 = vpop.f32.mrf.mxu0
    %v1251 = vadd.f32 %v1208, %v1250
    %1252 = vdwg.mxu0
    %1253 = vmatprep.subr.bf16.mxu0 %v942
    %1254 = vmatpush1.bf16.msra.mxu0 %v941
    %1255 = vmatprep.subr.bf16.mxu0 %v938
    %1256 = vmatpush1.bf16.msra.mxu0 %v937
    %1257 = vmatprep.subr.bf16.mxu0 %v934
    %1258 = vmatpush1.bf16.msra.mxu0 %v933
    %1259 = vmatprep.subr.bf16.mxu0 %v930
    %1260 = vmatpush1.bf16.msra.mxu0 %v929
    %1261 = vmatprep.subr.bf16.mxu0 %v926
    %1262 = vmatpush1.bf16.msra.mxu0 %v925
    %1263 = vmatprep.subr.bf16.mxu0 %v922
    %1264 = vmatpush1.bf16.msra.mxu0 %v921
    %1265 = vmatprep.subr.bf16.mxu0 %v918
    %1266 = vmatpush1.bf16.msra.mxu0 %v917
    %1267 = vmatprep.subr.bf16.mxu0 %v914
    %1268 = vmatpush1.bf16.msra.mxu0 %v913
    %1269 = vmatprep.subr.bf16.mxu0 %v974
    %1270 = vmatpush2.bf16.msra.mxu0 %v973
    %1271 = vmatprep.subr.bf16.mxu0 %v970
    %1272 = vmatpush2.bf16.msra.mxu0 %v969
    %1273 = vmatprep.subr.bf16.mxu0 %v966
    %1274 = vmatpush2.bf16.msra.mxu0 %v965
    %1275 = vmatprep.subr.bf16.mxu0 %v962
    %1276 = vmatpush2.bf16.msra.mxu0 %v961
    %1277 = vmatprep.subr.bf16.mxu0 %v958
    %1278 = vmatpush2.bf16.msra.mxu0 %v957
    %1279 = vmatprep.subr.bf16.mxu0 %v954
    %1280 = vmatpush2.bf16.msra.mxu0 %v953
    %1281 = vmatprep.subr.bf16.mxu0 %v950
    %1282 = vmatpush2.bf16.msra.mxu0 %v949
    %1283 = vmatprep.subr.bf16.mxu0 %v946
    %1284 = vmatpush2.bf16.msra.mxu0 %v945
    %1285 = vmatprep.mubr.bf16.mxu0 %v524
    %1286 = vmatmul.mubr.bf16.gmra.mxu0 %v523
    %v1287 = vpop.f32.mrf.mxu0
    %v1288 = vadd.f32 0.0, %v1287
    %v1289 = vpop.f32.mrf.mxu0
    %v1290 = vadd.f32 0.0, %v1289
    %v1291 = vpop.f32.mrf.mxu0
    %v1292 = vadd.f32 0.0, %v1291
    %v1293 = vpop.f32.mrf.mxu0
    %v1294 = vadd.f32 0.0, %v1293
    %1295 = vdwg.mxu0
    %1296 = vmatprep.subr.bf16.mxu0 %v1006
    %1297 = vmatpush1.bf16.msra.mxu0 %v1005
    %1298 = vmatprep.subr.bf16.mxu0 %v1002
    %1299 = vmatpush1.bf16.msra.mxu0 %v1001
    %1300 = vmatprep.subr.bf16.mxu0 %v998
    %1301 = vmatpush1.bf16.msra.mxu0 %v997
    %1302 = vmatprep.subr.bf16.mxu0 %v994
    %1303 = vmatpush1.bf16.msra.mxu0 %v993
    %1304 = vmatprep.subr.bf16.mxu0 %v990
    %1305 = vmatpush1.bf16.msra.mxu0 %v989
    %1306 = vmatprep.subr.bf16.mxu0 %v986
    %1307 = vmatpush1.bf16.msra.mxu0 %v985
    %1308 = vmatprep.subr.bf16.mxu0 %v982
    %1309 = vmatpush1.bf16.msra.mxu0 %v981
    %1310 = vmatprep.subr.bf16.mxu0 %v978
    %1311 = vmatpush1.bf16.msra.mxu0 %v977
    %1312 = vmatprep.subr.bf16.mxu0 %v1038
    %1313 = vmatpush2.bf16.msra.mxu0 %v1037
    %1314 = vmatprep.subr.bf16.mxu0 %v1034
    %1315 = vmatpush2.bf16.msra.mxu0 %v1033
    %1316 = vmatprep.subr.bf16.mxu0 %v1030
    %1317 = vmatpush2.bf16.msra.mxu0 %v1029
    %1318 = vmatprep.subr.bf16.mxu0 %v1026
    %1319 = vmatpush2.bf16.msra.mxu0 %v1025
    %1320 = vmatprep.subr.bf16.mxu0 %v1022
    %1321 = vmatpush2.bf16.msra.mxu0 %v1021
    %1322 = vmatprep.subr.bf16.mxu0 %v1018
    %1323 = vmatpush2.bf16.msra.mxu0 %v1017
    %1324 = vmatprep.subr.bf16.mxu0 %v1014
    %1325 = vmatpush2.bf16.msra.mxu0 %v1013
    %1326 = vmatprep.subr.bf16.mxu0 %v1010
    %1327 = vmatpush2.bf16.msra.mxu0 %v1009
    %1328 = vmatprep.mubr.bf16.mxu0 %v526
    %1329 = vmatmul.mubr.bf16.gmra.mxu0 %v525
    %v1330 = vpop.f32.mrf.mxu0
    %v1331 = vadd.f32 %v1288, %v1330
    %v1332 = vpop.f32.mrf.mxu0
    %v1333 = vadd.f32 %v1290, %v1332
    %v1334 = vpop.f32.mrf.mxu0
    %v1335 = vadd.f32 %v1292, %v1334
    %v1336 = vpop.f32.mrf.mxu0
    %v1337 = vadd.f32 %v1294, %v1336
    %1338 = vdwg.mxu0
    %v1339 = vadd.f32 %v1245, %v1249
    %v1340 = vrot.slane %v1339, 4
    %v1341 = vadd.f32 %v1339, %v1340
    %v1342 = vrot.slane %v1341, 2
    %v1343 = vadd.f32 %v1341, %v1342
    %v1344 = vrot.slane %v1343, 1
    %v1345 = vadd.f32 %v1343, %v1344
    %v1346 = vadd.f32 %v1247, %v1251
    %v1347 = vrot.slane %v1346, 4
    %v1348 = vadd.f32 %v1346, %v1347
    %v1349 = vrot.slane %v1348, 2
    %v1350 = vadd.f32 %v1348, %v1349
    %v1351 = vrot.slane %v1350, 1
    %v1352 = vadd.f32 %v1350, %v1351
    %v1353 = vadd.f32 %v1331, %v1335
    %v1354 = vrot.slane %v1353, 4
    %v1355 = vadd.f32 %v1353, %v1354
    %v1356 = vrot.slane %v1355, 2
    %v1357 = vadd.f32 %v1355, %v1356
    %v1358 = vrot.slane %v1357, 1
    %v1359 = vadd.f32 %v1357, %v1358
    %v1360 = vadd.f32 %v1333, %v1337
    %v1361 = vrot.slane %v1360, 4
    %v1362 = vadd.f32 %v1360, %v1361
    %v1363 = vrot.slane %v1362, 2
    %v1364 = vadd.f32 %v1362, %v1363
    %v1365 = vrot.slane %v1364, 1
    %v1366 = vadd.f32 %v1364, %v1365
    %v1367 = vrcp.pop 16.0
    %v1368 = vmul.f32 %v1345, %v1367
    %v1369 = vmul.f32 %v1352, %v1367
    %v1370 = vmul.f32 %v1359, %v1367
    %v1371 = vmul.f32 %v1366, %v1367
    %v1372 = vmul.f32 %v1245, %v1245
    %v1373 = vmul.f32 %v1247, %v1247
    %v1374 = vmul.f32 %v1331, %v1331
    %v1375 = vmul.f32 %v1333, %v1333
    %v1376 = vmul.f32 %v1249, %v1249
    %v1377 = vmul.f32 %v1251, %v1251
    %v1378 = vmul.f32 %v1335, %v1335
    %v1379 = vmul.f32 %v1337, %v1337
    %v1380 = vadd.f32 %v1372, %v1376
    %v1381 = vrot.slane %v1380, 4
    %v1382 = vadd.f32 %v1380, %v1381
    %v1383 = vrot.slane %v1382, 2
    %v1384 = vadd.f32 %v1382, %v1383
    %v1385 = vrot.slane %v1384, 1
    %v1386 = vadd.f32 %v1384, %v1385
    %v1387 = vadd.f32 %v1373, %v1377
    %v1388 = vrot.slane %v1387, 4
    %v1389 = vadd.f32 %v1387, %v1388
    %v1390 = vrot.slane %v1389, 2
    %v1391 = vadd.f32 %v1389, %v1390
    %v1392 = vrot.slane %v1391, 1
    %v1393 = vadd.f32 %v1391, %v1392
    %v1394 = vadd.f32 %v1374, %v1378
    %v1395 = vrot.slane %v1394, 4
    %v1396 = vadd.f32 %v1394, %v1395
    %v1397 = vrot.slane %v1396, 2
    %v1398 = vadd.f32 %v1396, %v1397
    %v1399 = vrot.slane %v1398, 1
    %v1400 = vadd.f32 %v1398, %v1399
    %v1401 = vadd.f32 %v1375, %v1379
    %v1402 = vrot.slane %v1401, 4
    %v1403 = vadd.f32 %v1401, %v1402
    %v1404 = vrot.slane %v1403, 2
    %v1405 = vadd.f32 %v1403, %v1404
    %v1406 = vrot.slane %v1405, 1
    %v1407 = vadd.f32 %v1405, %v1406
    %v1408 = vmul.f32 %v1386, %v1367
    %v1409 = vmul.f32 %v1393, %v1367
    %v1410 = vmul.f32 %v1400, %v1367
    %v1411 = vmul.f32 %v1407, %v1367
    %v1412 = vmul.f32 %v1368, %v1368
    %v1413 = vmul.f32 %v1369, %v1369
    %v1414 = vmul.f32 %v1370, %v1370
    %v1415 = vmul.f32 %v1371, %v1371
    %v1416 = vsub.f32 %v1408, %v1412
    %v1417 = vsub.f32 %v1409, %v1413
    %v1418 = vsub.f32 %v1410, %v1414
    %v1419 = vsub.f32 %v1411, %v1415
    %v1420 = vmax.f32 %v1416, 0.0
    %v1421 = vmax.f32 %v1417, 0.0
    %v1422 = vmax.f32 %v1418, 0.0
    %v1423 = vmax.f32 %v1419, 0.0
    %v1424 = vadd.f32 %v1420, 1e-05
    %v1425 = vadd.f32 %v1421, 1e-05
    %v1426 = vadd.f32 %v1422, 1e-05
    %v1427 = vadd.f32 %v1423, 1e-05
    %v1428 = vrsqrt.pop %v1424
    %v1429 = vrsqrt.pop %v1425
    %v1430 = vrsqrt.pop %v1426
    %v1431 = vrsqrt.pop %v1427
    %v1436 = vcombine.low %v1428, %v1429
    %v1437 = vcombine.low %v1430, %v1431
    %v1439 = vunpack.c.l.s4 1966171168
    %v1440 = vunpack.c.0.s8 %v1439
    %v1441 = vlaneseq
    %v1442 = vshrl.u32 %v1441, 7
    %v1443 = vsub.s32 %v1440, %v1442
    %v1444 = vrot.slane %v1436, %v1443
    %v1446 = vunpack.c.l.s4 1966171168
    %v1447 = vunpack.c.0.s8 %v1446
    %v1448 = vlaneseq
    %v1449 = vshrl.u32 %v1448, 7
    %v1450 = vsub.s32 %v1447, %v1449
    %v1451 = vrot.slane %v1437, %v1450
    %v1452 = vcombine.low %v1444, %v1451
    %v1454 = vunpack.c.l.s4 1966171168
    %v1455 = vunpack.c.0.s8 %v1454
    %v1456 = vlaneseq
    %v1457 = vshrl.u32 %v1456, 7
    %v1458 = vsub.s32 %v1455, %v1457
    %v1459 = vrot.slane %v1452, %v1458
    %v1461 = vmul.f32 %v84, %v1459
    %v1463 = vlaneseq
    %v1464 = vshrl.u32 %v1463, 7
    %v1465 = vsub.s32 0, %v1464
    %v1466 = vrot.slane %v1461, %v1465
    %v1467 = vlaneseq
    %v1468 = vshrl.u32 %v1467, 7
    %v1469 = vsub.s32 1, %v1468
    %v1470 = vrot.slane %v1461, %v1469
    %v1471 = vlaneseq
    %v1472 = vshrl.u32 %v1471, 7
    %v1473 = vsub.s32 2, %v1472
    %v1474 = vrot.slane %v1461, %v1473
    %v1475 = vlaneseq
    %v1476 = vshrl.u32 %v1475, 7
    %v1477 = vsub.s32 3, %v1476
    %v1478 = vrot.slane %v1461, %v1477
    %v1483 = vmul.f32 %v1368, %v1466
    %v1484 = vmul.f32 %v1369, %v1470
    %v1485 = vmul.f32 %v1370, %v1474
    %v1486 = vmul.f32 %v1371, %v1478
    %v1491 = vcombine.low %v1483, %v1484
    %v1492 = vcombine.low %v1485, %v1486
    %v1494 = vunpack.c.l.s4 1966171168
    %v1495 = vunpack.c.0.s8 %v1494
    %v1496 = vlaneseq
    %v1497 = vshrl.u32 %v1496, 7
    %v1498 = vsub.s32 %v1495, %v1497
    %v1499 = vrot.slane %v1491, %v1498
    %v1501 = vunpack.c.l.s4 1966171168
    %v1502 = vunpack.c.0.s8 %v1501
    %v1503 = vlaneseq
    %v1504 = vshrl.u32 %v1503, 7
    %v1505 = vsub.s32 %v1502, %v1504
    %v1506 = vrot.slane %v1492, %v1505
    %v1507 = vcombine.low %v1499, %v1506
    %v1509 = vunpack.c.l.s4 1966171168
    %v1510 = vunpack.c.0.s8 %v1509
    %v1511 = vlaneseq
    %v1512 = vshrl.u32 %v1511, 7
    %v1513 = vsub.s32 %v1510, %v1512
    %v1514 = vrot.slane %v1507, %v1513
    %v1516 = vsub.f32 %v86, %v1514
    %v1517 = vmul.f32 %v1245, %v1466
    %v1518 = vmul.f32 %v1247, %v1470
    %v1519 = vmul.f32 %v1331, %v1474
    %v1520 = vmul.f32 %v1333, %v1478
    %v1521 = vmul.f32 %v1249, %v1466
    %v1522 = vmul.f32 %v1251, %v1470
    %v1523 = vmul.f32 %v1335, %v1474
    %v1524 = vmul.f32 %v1337, %v1478
    %v1526 = vlaneseq
    %v1527 = vshrl.u32 %v1526, 7
    %v1528 = vsub.s32 0, %v1527
    %v1529 = vrot.slane %v1516, %v1528
    %v1530 = vlaneseq
    %v1531 = vshrl.u32 %v1530, 7
    %v1532 = vsub.s32 1, %v1531
    %v1533 = vrot.slane %v1516, %v1532
    %v1534 = vlaneseq
    %v1535 = vshrl.u32 %v1534, 7
    %v1536 = vsub.s32 2, %v1535
    %v1537 = vrot.slane %v1516, %v1536
    %v1538 = vlaneseq
    %v1539 = vshrl.u32 %v1538, 7
    %v1540 = vsub.s32 3, %v1539
    %v1541 = vrot.slane %v1516, %v1540
    %v1546 = vadd.f32 %v1517, %v1529
    %v1547 = vadd.f32 %v1518, %v1533
    %v1548 = vadd.f32 %v1519, %v1537
    %v1549 = vadd.f32 %v1520, %v1541
    %v1550 = vadd.f32 %v1521, %v1529
    %v1551 = vadd.f32 %v1522, %v1533
    %v1552 = vadd.f32 %v1523, %v1537
    %v1553 = vadd.f32 %v1524, %v1541
    %v1554 = vmax.f32 %v1546, 0.0
    %v1555 = vmax.f32 %v1547, 0.0
    %v1556 = vmax.f32 %v1548, 0.0
    %v1557 = vmax.f32 %v1549, 0.0
    %v1558 = vmax.f32 %v1550, 0.0
    %v1559 = vmax.f32 %v1551, 0.0
    %v1560 = vmax.f32 %v1552, 0.0
    %v1561 = vmax.f32 %v1553, 0.0
    %v1562 = vpack.c.bf16 %v1558, %v1554
    %v1563 = vpack.c.bf16 %v1559, %v1555
    %v1564 = vpack.c.bf16 %v1560, %v1556
    %v1565 = vpack.c.bf16 %v1561, %v1557
    %v1566 = vld [vmem:[#allocation8] sm:$0xf]
    %v1567 = vld [vmem:[#allocation8 + $0x4] sm:$0xf]
    %v1568 = vld [vmem:[#allocation8 + $0x8] sm:$0xf]
    %v1569 = vld [vmem:[#allocation8 + $0xc] sm:$0xf]
    %v1570 = vld [vmem:[#allocation8 + $0x10] sm:$0xf]
    %v1571 = vld [vmem:[#allocation8 + $0x14] sm:$0xf]
    %v1572 = vld [vmem:[#allocation8 + $0x18] sm:$0xf]
    %v1573 = vld [vmem:[#allocation8 + $0x1c] sm:$0xf]
    %v1574 = vld [vmem:[#allocation8 + $0x20] sm:$0xf]
    %v1575 = vld [vmem:[#allocation8 + $0x24] sm:$0xf]
    %v1576 = vld [vmem:[#allocation8 + $0x28] sm:$0xf]
    %v1577 = vld [vmem:[#allocation8 + $0x2c] sm:$0xf]
    %v1578 = vld [vmem:[#allocation8 + $0x30] sm:$0xf]
    %v1579 = vld [vmem:[#allocation8 + $0x34] sm:$0xf]
    %v1580 = vld [vmem:[#allocation8 + $0x38] sm:$0xf]
    %v1581 = vld [vmem:[#allocation8 + $0x3c] sm:$0xf]
    %v1582 = vld [vmem:[#allocation8 + $0x40] sm:$0xf]
    %v1583 = vld [vmem:[#allocation8 + $0x44] sm:$0xf]
    %v1584 = vld [vmem:[#allocation8 + $0x48] sm:$0xf]
    %v1585 = vld [vmem:[#allocation8 + $0x4c] sm:$0xf]
    %v1586 = vld [vmem:[#allocation8 + $0x50] sm:$0xf]
    %v1587 = vld [vmem:[#allocation8 + $0x54] sm:$0xf]
    %v1588 = vld [vmem:[#allocation8 + $0x58] sm:$0xf]
    %v1589 = vld [vmem:[#allocation8 + $0x5c] sm:$0xf]
    %v1590 = vld [vmem:[#allocation8 + $0x60] sm:$0xf]
    %v1591 = vld [vmem:[#allocation8 + $0x64] sm:$0xf]
    %v1592 = vld [vmem:[#allocation8 + $0x68] sm:$0xf]
    %v1593 = vld [vmem:[#allocation8 + $0x6c] sm:$0xf]
    %v1594 = vld [vmem:[#allocation8 + $0x70] sm:$0xf]
    %v1595 = vld [vmem:[#allocation8 + $0x74] sm:$0xf]
    %v1596 = vld [vmem:[#allocation8 + $0x78] sm:$0xf]
    %v1597 = vld [vmem:[#allocation8 + $0x7c] sm:$0xf]
    %v1598 = vld [vmem:[#allocation8 + $0x80] sm:$0xf]
    %v1599 = vld [vmem:[#allocation8 + $0x84] sm:$0xf]
    %v1600 = vld [vmem:[#allocation8 + $0x88] sm:$0xf]
    %v1601 = vld [vmem:[#allocation8 + $0x8c] sm:$0xf]
    %v1602 = vld [vmem:[#allocation8 + $0x90] sm:$0xf]
    %v1603 = vld [vmem:[#allocation8 + $0x94] sm:$0xf]
    %v1604 = vld [vmem:[#allocation8 + $0x98] sm:$0xf]
    %v1605 = vld [vmem:[#allocation8 + $0x9c] sm:$0xf]
    %v1606 = vld [vmem:[#allocation8 + $0xa0] sm:$0xf]
    %v1607 = vld [vmem:[#allocation8 + $0xa4] sm:$0xf]
    %v1608 = vld [vmem:[#allocation8 + $0xa8] sm:$0xf]
    %v1609 = vld [vmem:[#allocation8 + $0xac] sm:$0xf]
    %v1610 = vld [vmem:[#allocation8 + $0xb0] sm:$0xf]
    %v1611 = vld [vmem:[#allocation8 + $0xb4] sm:$0xf]
    %v1612 = vld [vmem:[#allocation8 + $0xb8] sm:$0xf]
    %v1613 = vld [vmem:[#allocation8 + $0xbc] sm:$0xf]
    %v1614 = vld [vmem:[#allocation8 + $0xc0] sm:$0xf]
    %v1615 = vld [vmem:[#allocation8 + $0xc4] sm:$0xf]
    %v1616 = vld [vmem:[#allocation8 + $0xc8] sm:$0xf]
    %v1617 = vld [vmem:[#allocation8 + $0xcc] sm:$0xf]
    %v1618 = vld [vmem:[#allocation8 + $0xd0] sm:$0xf]
    %v1619 = vld [vmem:[#allocation8 + $0xd4] sm:$0xf]
    %v1620 = vld [vmem:[#allocation8 + $0xd8] sm:$0xf]
    %v1621 = vld [vmem:[#allocation8 + $0xdc] sm:$0xf]
    %v1622 = vld [vmem:[#allocation8 + $0xe0] sm:$0xf]
    %v1623 = vld [vmem:[#allocation8 + $0xe4] sm:$0xf]
    %v1624 = vld [vmem:[#allocation8 + $0xe8] sm:$0xf]
    %v1625 = vld [vmem:[#allocation8 + $0xec] sm:$0xf]
    %v1626 = vld [vmem:[#allocation8 + $0xf0] sm:$0xf]
    %v1627 = vld [vmem:[#allocation8 + $0xf4] sm:$0xf]
    %v1628 = vld [vmem:[#allocation8 + $0xf8] sm:$0xf]
    %v1629 = vld [vmem:[#allocation8 + $0xfc] sm:$0xf]
    %v1630 = vlaneseq
    %v1631 = vshrl.u32 %v1630, 7
    %v1632 = vsub.s32 0, %v1631
    %v1633 = vrot.slane %v87, %v1632
    %v1698 = vunpack.c.l.b16 %v1566
    %v1699 = vunpack.c.l.b16 %v1567
    %v1700 = vunpack.c.l.b16 %v1568
    %v1701 = vunpack.c.l.b16 %v1569
    %v1702 = vunpack.c.l.b16 %v1570
    %v1703 = vunpack.c.l.b16 %v1571
    %v1704 = vunpack.c.l.b16 %v1572
    %v1705 = vunpack.c.l.b16 %v1573
    %v1706 = vunpack.c.l.b16 %v1574
    %v1707 = vunpack.c.l.b16 %v1575
    %v1708 = vunpack.c.l.b16 %v1576
    %v1709 = vunpack.c.l.b16 %v1577
    %v1710 = vunpack.c.l.b16 %v1578
    %v1711 = vunpack.c.l.b16 %v1579
    %v1712 = vunpack.c.l.b16 %v1580
    %v1713 = vunpack.c.l.b16 %v1581
    %v1714 = vunpack.c.l.b16 %v1582
    %v1715 = vunpack.c.l.b16 %v1583
    %v1716 = vunpack.c.l.b16 %v1584
    %v1717 = vunpack.c.l.b16 %v1585
    %v1718 = vunpack.c.l.b16 %v1586
    %v1719 = vunpack.c.l.b16 %v1587
    %v1720 = vunpack.c.l.b16 %v1588
    %v1721 = vunpack.c.l.b16 %v1589
    %v1722 = vunpack.c.l.b16 %v1590
    %v1723 = vunpack.c.l.b16 %v1591
    %v1724 = vunpack.c.l.b16 %v1592
    %v1725 = vunpack.c.l.b16 %v1593
    %v1726 = vunpack.c.l.b16 %v1594
    %v1727 = vunpack.c.l.b16 %v1595
    %v1728 = vunpack.c.l.b16 %v1596
    %v1729 = vunpack.c.l.b16 %v1597
    %v1730 = vunpack.c.l.b16 %v1598
    %v1731 = vunpack.c.l.b16 %v1599
    %v1732 = vunpack.c.l.b16 %v1600
    %v1733 = vunpack.c.l.b16 %v1601
    %v1734 = vunpack.c.l.b16 %v1602
    %v1735 = vunpack.c.l.b16 %v1603
    %v1736 = vunpack.c.l.b16 %v1604
    %v1737 = vunpack.c.l.b16 %v1605
    %v1738 = vunpack.c.l.b16 %v1606
    %v1739 = vunpack.c.l.b16 %v1607
    %v1740 = vunpack.c.l.b16 %v1608
    %v1741 = vunpack.c.l.b16 %v1609
    %v1742 = vunpack.c.l.b16 %v1610
    %v1743 = vunpack.c.l.b16 %v1611
    %v1744 = vunpack.c.l.b16 %v1612
    %v1745 = vunpack.c.l.b16 %v1613
    %v1746 = vunpack.c.l.b16 %v1614
    %v1747 = vunpack.c.l.b16 %v1615
    %v1748 = vunpack.c.l.b16 %v1616
    %v1749 = vunpack.c.l.b16 %v1617
    %v1750 = vunpack.c.l.b16 %v1618
    %v1751 = vunpack.c.l.b16 %v1619
    %v1752 = vunpack.c.l.b16 %v1620
    %v1753 = vunpack.c.l.b16 %v1621
    %v1754 = vunpack.c.l.b16 %v1622
    %v1755 = vunpack.c.l.b16 %v1623
    %v1756 = vunpack.c.l.b16 %v1624
    %v1757 = vunpack.c.l.b16 %v1625
    %v1758 = vunpack.c.l.b16 %v1626
    %v1759 = vunpack.c.l.b16 %v1627
    %v1760 = vunpack.c.l.b16 %v1628
    %v1761 = vunpack.c.l.b16 %v1629
    %v1762 = vpack.c.b16 %v1699, %v1698
    %v1763 = vpack.c.b16 %v1701, %v1700
    %v1764 = vpack.c.b16 %v1703, %v1702
    %v1765 = vpack.c.b16 %v1705, %v1704
    %v1766 = vpack.c.b16 %v1707, %v1706
    %v1767 = vpack.c.b16 %v1709, %v1708
    %v1768 = vpack.c.b16 %v1711, %v1710
    %v1769 = vpack.c.b16 %v1713, %v1712
    %v1770 = vpack.c.b16 %v1715, %v1714
    %v1771 = vpack.c.b16 %v1717, %v1716
    %v1772 = vpack.c.b16 %v1719, %v1718
    %v1773 = vpack.c.b16 %v1721, %v1720
    %v1774 = vpack.c.b16 %v1723, %v1722
    %v1775 = vpack.c.b16 %v1725, %v1724
    %v1776 = vpack.c.b16 %v1727, %v1726
    %v1777 = vpack.c.b16 %v1729, %v1728
    %v1778 = vpack.c.b16 %v1731, %v1730
    %v1779 = vpack.c.b16 %v1733, %v1732
    %v1780 = vpack.c.b16 %v1735, %v1734
    %v1781 = vpack.c.b16 %v1737, %v1736
    %v1782 = vpack.c.b16 %v1739, %v1738
    %v1783 = vpack.c.b16 %v1741, %v1740
    %v1784 = vpack.c.b16 %v1743, %v1742
    %v1785 = vpack.c.b16 %v1745, %v1744
    %v1786 = vpack.c.b16 %v1747, %v1746
    %v1787 = vpack.c.b16 %v1749, %v1748
    %v1788 = vpack.c.b16 %v1751, %v1750
    %v1789 = vpack.c.b16 %v1753, %v1752
    %v1790 = vpack.c.b16 %v1755, %v1754
    %v1791 = vpack.c.b16 %v1757, %v1756
    %v1792 = vpack.c.b16 %v1759, %v1758
    %v1793 = vpack.c.b16 %v1761, %v1760
    %1826 = vmatprep.subr.bf16.mxu0 0
    %1827 = vmatpush1.bf16.msra.mxu0 %v1769
    %1828 = vmatprep.subr.bf16.mxu0 0
    %1829 = vmatpush1.bf16.msra.mxu0 %v1768
    %1830 = vmatprep.subr.bf16.mxu0 0
    %1831 = vmatpush1.bf16.msra.mxu0 %v1767
    %1832 = vmatprep.subr.bf16.mxu0 0
    %1833 = vmatpush1.bf16.msra.mxu0 %v1766
    %1834 = vmatprep.subr.bf16.mxu0 0
    %1835 = vmatpush1.bf16.msra.mxu0 %v1765
    %1836 = vmatprep.subr.bf16.mxu0 0
    %1837 = vmatpush1.bf16.msra.mxu0 %v1764
    %1838 = vmatprep.subr.bf16.mxu0 0
    %1839 = vmatpush1.bf16.msra.mxu0 %v1763
    %1840 = vmatprep.subr.bf16.mxu0 0
    %1841 = vmatpush1.bf16.msra.mxu0 %v1762
    %1842 = vmatprep.subr.bf16.mxu0 0
    %1843 = vmatpush2.bf16.msra.mxu0 %v1777
    %1844 = vmatprep.subr.bf16.mxu0 0
    %1845 = vmatpush2.bf16.msra.mxu0 %v1776
    %1846 = vmatprep.subr.bf16.mxu0 0
    %1847 = vmatpush2.bf16.msra.mxu0 %v1775
    %1848 = vmatprep.subr.bf16.mxu0 0
    %1849 = vmatpush2.bf16.msra.mxu0 %v1774
    %1850 = vmatprep.subr.bf16.mxu0 0
    %1851 = vmatpush2.bf16.msra.mxu0 %v1773
    %1852 = vmatprep.subr.bf16.mxu0 0
    %1853 = vmatpush2.bf16.msra.mxu0 %v1772
    %1854 = vmatprep.subr.bf16.mxu0 0
    %1855 = vmatpush2.bf16.msra.mxu0 %v1771
    %1856 = vmatprep.subr.bf16.mxu0 0
    %1857 = vmatpush2.bf16.msra.mxu0 %v1770
    %1858 = vmatprep.mubr.bf16.mxu0 %v1563
    %1859 = vmatmul.mubr.bf16.gmra.mxu0 %v1562
    %v1860 = vpop.f32.mrf.mxu0
    %v1861 = vadd.f32 %v1633, %v1860
    %v1862 = vpop.f32.mrf.mxu0
    %v1863 = vpop.f32.mrf.mxu0
    %v1864 = vadd.f32 %v1633, %v1863
    %v1865 = vpop.f32.mrf.mxu0
    %1866 = vdwg.mxu0
    %1867 = vmatprep.subr.bf16.mxu0 0
    %1868 = vmatpush1.bf16.msra.mxu0 %v1785
    %1869 = vmatprep.subr.bf16.mxu0 0
    %1870 = vmatpush1.bf16.msra.mxu0 %v1784
    %1871 = vmatprep.subr.bf16.mxu0 0
    %1872 = vmatpush1.bf16.msra.mxu0 %v1783
    %1873 = vmatprep.subr.bf16.mxu0 0
    %1874 = vmatpush1.bf16.msra.mxu0 %v1782
    %1875 = vmatprep.subr.bf16.mxu0 0
    %1876 = vmatpush1.bf16.msra.mxu0 %v1781
    %1877 = vmatprep.subr.bf16.mxu0 0
    %1878 = vmatpush1.bf16.msra.mxu0 %v1780
    %1879 = vmatprep.subr.bf16.mxu0 0
    %1880 = vmatpush1.bf16.msra.mxu0 %v1779
    %1881 = vmatprep.subr.bf16.mxu0 0
    %1882 = vmatpush1.bf16.msra.mxu0 %v1778
    %1883 = vmatprep.subr.bf16.mxu0 0
    %1884 = vmatpush2.bf16.msra.mxu0 %v1793
    %1885 = vmatprep.subr.bf16.mxu0 0
    %1886 = vmatpush2.bf16.msra.mxu0 %v1792
    %1887 = vmatprep.subr.bf16.mxu0 0
    %1888 = vmatpush2.bf16.msra.mxu0 %v1791
    %1889 = vmatprep.subr.bf16.mxu0 0
    %1890 = vmatpush2.bf16.msra.mxu0 %v1790
    %1891 = vmatprep.subr.bf16.mxu0 0
    %1892 = vmatpush2.bf16.msra.mxu0 %v1789
    %1893 = vmatprep.subr.bf16.mxu0 0
    %1894 = vmatpush2.bf16.msra.mxu0 %v1788
    %1895 = vmatprep.subr.bf16.mxu0 0
    %1896 = vmatpush2.bf16.msra.mxu0 %v1787
    %1897 = vmatprep.subr.bf16.mxu0 0
    %1898 = vmatpush2.bf16.msra.mxu0 %v1786
    %1899 = vmatprep.mubr.bf16.mxu0 %v1565
    %1900 = vmatmul.mubr.bf16.gmra.mxu0 %v1564
    %v1901 = vpop.f32.mrf.mxu0
    %v1902 = vadd.f32 %v1861, %v1901
    %v1903 = vpop.f32.mrf.mxu0
    %v1904 = vpop.f32.mrf.mxu0
    %v1905 = vadd.f32 %v1864, %v1904
    %v1906 = vpop.f32.mrf.mxu0
    %1907 = vdwg.mxu0
    %1908 = vst [vmem:[#allocation11] sm:$0xff] %v1902
    %1909 = vst [vmem:[#allocation11 + $0x8] sm:$0xff] %v1905
    // Predicated region
    $region34: #{mlp_forward.1} parent=1 // pred_check
      _
    $region35: #{mlp_forward.1} parent=1 // pred_check_branch
      %1911 = sbr.rel (0) target = $region37
    $region36: #{mlp_forward.1} parent=1 // pred_region
      %s1913 = ssub.s32 256, 256
      %1914 = vsyncadd [#allocation5], %s1913
      %s1915 = sshll.u32 [#allocation11], 4
      %s1916 = int_to_ptr.vmem [resolvable:$true] %s1915
      %1921 = dma.vmem_to_hbm [thread:$0]  %s1916, 256, %s4, [#allocation5], 128, 128, 8
    $region37: #{mlp_forward.1} parent=1 // pred_fallthru
      _
    // Predicated region
    $region38: #{mlp_forward.1} parent=1 // pred_check
      _
    $region39: #{mlp_forward.1} parent=1 // pred_check_branch
      %1923 = sbr.rel (0) target = $region41
    $region40: #{mlp_forward.1} parent=1 // pred_region
      %1924 = dma.done [#allocation5], 256
    $region41: #{mlp_forward.1} parent=1 // pred_fallthru
      _
    %1925 = vsyncpa [#allocation4], 1
    %1926 = vsyncpa [#allocation7], 1
    %1927 = vsyncpa [#allocation10], 1
    %1928 = vsyncpa [#allocation5], 1

</llo_original>
